<compile_context>
chip_gen: v7x
topology: tpu7x:2x2x1
jax: 0.10.0
libtpu: 0.0.40
codegen_flags: <defaults>
</compile_context>

<pallas_src>
import functools

import jax
import jax.numpy as jnp
from jax.experimental import pallas as pl
from jax.experimental.pallas import tpu as pltpu

DP = 128  # lane-dense padded feature width


# ----------------------------------------------------------------------------
# in-kernel math helpers
# ----------------------------------------------------------------------------
def _layernorm(x, gamma, beta, eps, inv_d):
    # Padded lanes of x are zero; gamma/beta are zero-padded, so the output's padded lanes
    # stay zero.  Statistics use the true feature count via inv_d and E[x^2]-mu^2.
    mu = jnp.sum(x, axis=-1, keepdims=True) * inv_d
    var = jnp.sum(x * x, axis=-1, keepdims=True) * inv_d - mu * mu
    return (x - mu) * jax.lax.rsqrt(var + eps) * gamma + beta


def _gelu(x):
    # TODO(synk): tanh-approx GELU (PyTorch nn.GELU() default is exact erf); max abs
    # deviation ~1e-3, well inside the bf16-operand tolerance used here.
    c = 0.7978845608028654  # sqrt(2/pi)
    return 0.5 * x * (1.0 + jnp.tanh(c * (x + 0.044715 * x * x * x)))


def _batched_attention(q, k, v, bt, nq, nk):
    # softmax(q @ k^T) @ v per batch element (1/sqrt(D) already folded into the Q weights).
    # Unrolled over the (small, static) batch tile; all dots are 2-D bf16 MXU ops with f32
    # accumulation.  Softmax reductions are over the true token count nk (never padded).
    q = q.astype(jnp.bfloat16)
    k = k.astype(jnp.bfloat16)
    v = v.astype(jnp.bfloat16)
    outs = []
    for b in range(bt):
        qb = q[b * nq:(b + 1) * nq]
        kb = k[b * nk:(b + 1) * nk]
        vb = v[b * nk:(b + 1) * nk]
        s = jax.lax.dot_general(qb, kb, (((1,), (1,)), ((), ())),
                                preferred_element_type=jnp.float32)
        s = s - jnp.max(s, axis=-1, keepdims=True)
        e = jnp.exp(s)
        prob = e * pl.reciprocal(jnp.sum(e, axis=-1, keepdims=True), approx=True)
        outs.append(jnp.dot(prob.astype(jnp.bfloat16), vb,
                            preferred_element_type=jnp.float32))
    return outs[0] if bt == 1 else jnp.concatenate(outs, axis=0)


def _mlp_inner(x, w1, b1, w2, b2):
    # fc2(GELU(fc1(x)))  (residual added by the caller; dropouts are identity)
    h = jnp.dot(x.astype(jnp.bfloat16), w1, preferred_element_type=jnp.float32) + b1
    h = _gelu(h)
    return jnp.dot(h.astype(jnp.bfloat16), w2, preferred_element_type=jnp.float32) + b2


# ----------------------------------------------------------------------------
# fused AttentionLayer kernel (one grid step == Bt batch elements)
# ----------------------------------------------------------------------------
# Weight-slab column layout (each column block is DP lanes wide, bf16):
#   0: e_wq*scale | 1: e_wk | 2: e_wv | 3: d_wq*scale | 4: e_wfc | 5: e_w1 | 6: e_w2
#   7: d_wk | 8: d_wv | 9: d_wfc | 10: d_w1 | 11: d_w2
# Bias-slab rows (f32, zero beyond true D):
#   0,1: p_ln g/b   2,3: ln1 g/b   4,5: enc-MHA ln g/b   6,7: enc mlp b1/b2
#   8,9: ln2 g/b  10,11: dec-MHA ln g/b  12,13: dec mlp b1/b2
def attention_layer_kernel(o_ref, p_ref, w_ref, b_ref, wc_ref, wcb_ref,
                           o_out_ref, p_out_ref,
                           *, bt, n_obj, n_patch, dp, inv_d):
    bf16 = jnp.bfloat16
    r_o, r_p = bt * n_obj, bt * n_patch
    o_f = o_ref[...].reshape(r_o, dp)            # flatten batch into sublane rows
    p_f = p_ref[...].reshape(r_p, dp)

    b_row = lambda r: b_ref[r:r + 1, :]
    w_col = lambda c0, c1: w_ref[:, c0 * dp:c1 * dp]   # 128-aligned static slices

    # AttentionLayer.p_i_layer_norm / ObjectEncoder.layer_norm1 (eps=1e-5)
    normed_p = _layernorm(p_f, b_row(0), b_row(1), 1e-5, inv_d)
    o_norm = _layernorm(o_f, b_row(2), b_row(3), 1e-5, inv_d)

    # One MXU push for everything projected from normed_p: encoder K, encoder V, decoder Q.
    pkv = jnp.dot(normed_p.astype(bf16), w_col(1, 4), preferred_element_type=jnp.float32)
    e_k = pkv[:, 0:dp]
    e_v = pkv[:, dp:2 * dp]
    d_q = pkv[:, 2 * dp:3 * dp]

    # ---------------- ObjectEncoder ----------------
    e_q = jnp.dot(o_norm.astype(bf16), w_col(0, 1), preferred_element_type=jnp.float32)
    att = _batched_attention(e_q, e_k, e_v, bt, n_obj, n_patch)
    att = jnp.dot(att.astype(bf16), w_col(4, 5), preferred_element_type=jnp.float32)
    att = _layernorm(att + o_norm, b_row(4), b_row(5), 1e-6, inv_d)        # MHA layer_norm
    o1 = o_norm + att                                                       # encoder residual
    # token mixing: o1 + W_c(o1 over tokens) + bias  (bias pre-broadcast, padded lanes = 0)
    wc = wc_ref[...]
    wcb = wcb_ref[...]
    mix = [jnp.dot(wc, o1[b * n_obj:(b + 1) * n_obj],
                   preferred_element_type=jnp.float32) + wcb
           for b in range(bt)]
    o1 = o1 + (mix[0] if bt == 1 else jnp.concatenate(mix, axis=0))
    o_i_1 = o1 + _mlp_inner(o1, w_col(5, 6), b_row(6), w_col(6, 7), b_row(7))
    o_out_ref[...] = o_i_1.reshape(bt, n_obj, dp).astype(o_out_ref.dtype)

    # ---------------- PatchDecoder ----------------
    k_norm = _layernorm(o_i_1, b_row(8), b_row(9), 1e-5, inv_d)
    dkv = jnp.dot(k_norm.astype(bf16), w_col(7, 9), preferred_element_type=jnp.float32)
    d_k = dkv[:, 0:dp]
    d_v = dkv[:, dp:2 * dp]
    att2 = _batched_attention(d_q, d_k, d_v, bt, n_patch, n_obj)
    att2 = jnp.dot(att2.astype(bf16), w_col(9, 10), preferred_element_type=jnp.float32)
    att2 = _layernorm(att2 + normed_p, b_row(10), b_row(11), 1e-6, inv_d)
    p1 = normed_p + att2
    # PyTorch: p_i_1 = p1 + MLP(p1), with MLP(x) = x + fc2(GELU(fc1(x)))  ->  2*p1 + inner
    p_out = 2.0 * p1 + _mlp_inner(p1, w_col(10, 11), b_row(12), w_col(11, 12), b_row(13))
    p_out_ref[...] = p_out.reshape(bt, n_patch, dp).astype(p_out_ref.dtype)


# ----------------------------------------------------------------------------
# one-time parameter packing (done once per model, not per forward)
# ----------------------------------------------------------------------------
def pack_params(P, objects_N, dim, dp=DP):
    f32 = jnp.float32

    def pad_sq(m):                                   # (dim,dim) -> (dp,dp), zero-padded
        return jnp.zeros((dp, dp), f32).at[:dim, :dim].set(m)

    def pad_row(v):                                  # (..,dim) -> (dp,), zero-padded
        return jnp.zeros((dp,), f32).at[:dim].set(v.reshape(-1))

    scale = 1.0 / (dim ** 0.5)                       # fold 1/sqrt(d_k) into the Q weights
    cols = [P["e_wq"] * scale, P["e_wk"], P["e_wv"], P["d_wq"] * scale,
            P["e_wfc"], P["e_w1"], P["e_w2"],
            P["d_wk"], P["d_wv"], P["d_wfc"], P["d_w1"], P["d_w2"]]
    w_slab = jnp.concatenate([pad_sq(c) for c in cols], axis=1).astype(jnp.bfloat16)

    rows = [P["p_g"], P["p_b"], P["ln1_g"], P["ln1_b"],
            P["e_ln_g"], P["e_ln_b"], P["e_b1"], P["e_b2"],
            P["ln2_g"], P["ln2_b"], P["d_ln_g"], P["d_ln_b"],
            P["d_b1"], P["d_b2"]]
    b_slab = jnp.stack([pad_row(r) for r in rows] + [jnp.zeros((dp,), f32)] * 2, axis=0)

    wcb = jnp.zeros((objects_N, dp), f32).at[:, :dim].set(
        jnp.broadcast_to(P["wc_b"].reshape(objects_N, 1), (objects_N, dim)))
    return dict(w=w_slab, b=b_slab, wc=P["wc"].astype(f32), wcb=wcb)


# ----------------------------------------------------------------------------
# AttentionLayer.forward  (single fused pallas_call, batch-blocked grid)
# ----------------------------------------------------------------------------
def _pick_bt(B, max_bt=8):
    # Largest batch tile that still leaves >=2 grid steps (so both v7x TCs get work),
    # capped to bound VMEM.
    if B <= 1:
        return 1
    bt = max(1, min(max_bt, B // 2))
    while B % bt:
        bt -= 1
    return bt


def attention_layer_forward(W, o_i, p_i, h, w, dp=DP):
    # TODO(synk): sim_mask cosine-similarity branch not implemented (sim_mask=None default);
    # h, w are only consumed by that branch.
    del h, w
    B, No, D = o_i.shape
    _, Np, _ = p_i.shape
    bt = _pick_bt(B)
    grid = (B // bt,)

    # lane-dense padding of the activations (padded lanes are zero -> LN stats stay exact)
    o_pad = jnp.pad(o_i, ((0, 0), (0, 0), (0, dp - D)))
    p_pad = jnp.pad(p_i, ((0, 0), (0, 0), (0, dp - D)))

    kernel = functools.partial(attention_layer_kernel, bt=bt, n_obj=No, n_patch=Np,
                               dp=dp, inv_d=1.0 / D)

    flops = int(2 * B * (dp * dp * (6 * No + 6 * Np) + dp * (4 * No * Np + No * No)))
    transcendentals = int(B * (2 * No * Np + (No + Np) * dp))
    bytes_accessed = int(4 * 2 * (o_pad.size + p_pad.size) + 2 * W["w"].size
                         + 4 * (W["b"].size + W["wc"].size + W["wcb"].size))

    o_out, p_out = pl.pallas_call(
        kernel,
        out_shape=(jax.ShapeDtypeStruct((B, No, dp), o_i.dtype),
                   jax.ShapeDtypeStruct((B, Np, dp), p_i.dtype)),
        grid=grid,
        in_specs=[
            pl.BlockSpec((bt, No, dp), lambda i: (i, 0, 0)),    # o_i   (padded)
            pl.BlockSpec((bt, Np, dp), lambda i: (i, 0, 0)),    # p_i   (padded)
            pl.BlockSpec((dp, 12 * dp), lambda i: (0, 0)),      # consolidated weight slab
            pl.BlockSpec((16, dp), lambda i: (0, 0)),           # consolidated LN/bias slab
            pl.BlockSpec((No, No), lambda i: (0, 0)),           # W_c
            pl.BlockSpec((No, dp), lambda i: (0, 0)),           # W_c bias (pre-broadcast)
        ],
        out_specs=[pl.BlockSpec((bt, No, dp), lambda i: (i, 0, 0)),
                   pl.BlockSpec((bt, Np, dp), lambda i: (i, 0, 0))],
        compiler_params=pltpu.CompilerParams(
            dimension_semantics=("parallel",),     # v7x: TCs split the batch-block grid
            vmem_limit_bytes=32 << 20),            # above v5e's 16 MiB scoped default
        cost_estimate=pl.CostEstimate(flops=flops, transcendentals=transcendentals,
                                      bytes_accessed=bytes_accessed),
    )(o_pad, p_pad, W["w"], W["b"], W["wc"], W["wcb"])
    return o_out[..., :D], p_out[..., :D]


# ----------------------------------------------------------------------------
# Pure-JAX reference (mirrors the PyTorch module for a numerical check)
# ----------------------------------------------------------------------------
def _ref_ln(x, g, b, eps):
    mu = x.mean(-1, keepdims=True)
    var = ((x - mu) ** 2).mean(-1, keepdims=True)
    return (x - mu) / jnp.sqrt(var + eps) * g.reshape(-1) + b.reshape(-1)


def _ref_mha(q, kv, wq, wk, wv, wfc, g, b, eps=1e-6):
    D = q.shape[-1]
    Q, K, V = q @ wq, kv @ wk, kv @ wv
    s = (Q / jnp.sqrt(jnp.float32(D))) @ jnp.swapaxes(K, 1, 2)
    a = jax.nn.softmax(s, axis=-1)
    o = a @ V @ wfc + q
    return _ref_ln(o, g, b, eps)


def _ref_mlp(x, w1, b1, w2, b2):
    h = x @ w1 + b1.reshape(-1)
    h = 0.5 * h * (1.0 + jax.scipy.special.erf(h / jnp.sqrt(jnp.float32(2.0))))
    return x + h @ w2 + b2.reshape(-1)


def reference_forward(P, o_i, p_i, h, w):
    normed_p = _ref_ln(p_i, P["p_g"], P["p_b"], 1e-5)
    o_norm = _ref_ln(o_i, P["ln1_g"], P["ln1_b"], 1e-5)
    att = _ref_mha(o_norm, normed_p, P["e_wq"], P["e_wk"], P["e_wv"], P["e_wfc"],
                   P["e_ln_g"], P["e_ln_b"])
    o1 = o_norm + att
    o1 = o1 + jnp.einsum("nm,bmd->bnd", P["wc"], o1) + P["wc_b"].reshape(1, -1, 1)
    o_i_1 = _ref_mlp(o1, P["e_w1"], P["e_b1"], P["e_w2"], P["e_b2"])
    k_norm = _ref_ln(o_i_1, P["ln2_g"], P["ln2_b"], 1e-5)
    att2 = _ref_mha(normed_p, k_norm, P["d_wq"], P["d_wk"], P["d_wv"], P["d_wfc"],
                    P["d_ln_g"], P["d_ln_b"])
    p1 = normed_p + att2
    p_i_1 = p1 + _ref_mlp(p1, P["d_w1"], P["d_b1"], P["d_w2"], P["d_b2"])
    return o_i_1, p_i_1


# ----------------------------------------------------------------------------
# main
# ----------------------------------------------------------------------------
if __name__ == "__main__":
    B, objects_N, dim, h, w = 2, 8, 32, 4, 4
    N_patch = h * w

    key = jax.random.PRNGKey(0)
    ks = iter(jax.random.split(key, 32))

    def tn(shape, std=0.02):
        return std * jax.random.truncated_normal(next(ks), -2.0, 2.0, shape, jnp.float32)

    ones = lambda d: jnp.ones((1, d), jnp.float32)
    zeros = lambda d: jnp.zeros((1, d), jnp.float32)

    # Parameters (deterministic synthetic init; Linear weights stored as (in, out) = W^T).
    P = {
        "p_g": ones(dim), "p_b": zeros(dim),
        "ln1_g": ones(dim), "ln1_b": zeros(dim),
        "e_wq": tn((dim, dim)), "e_wk": tn((dim, dim)),
        "e_wv": tn((dim, dim)), "e_wfc": tn((dim, dim)),
        "e_ln_g": ones(dim), "e_ln_b": zeros(dim),
        "wc": tn((objects_N, objects_N)), "wc_b": tn((objects_N, 1)),
        "e_w1": tn((dim, dim)), "e_b1": tn((1, dim)),
        "e_w2": tn((dim, dim)), "e_b2": tn((1, dim)),
        "ln2_g": ones(dim), "ln2_b": zeros(dim),
        "d_wq": tn((dim, dim)), "d_wk": tn((dim, dim)),
        "d_wv": tn((dim, dim)), "d_wfc": tn((dim, dim)),
        "d_ln_g": ones(dim), "d_ln_b": zeros(dim),
        "d_w1": tn((dim, dim)), "d_b1": tn((1, dim)),
        "d_w2": tn((dim, dim)), "d_b2": tn((1, dim)),
    }

    o_i = jax.random.normal(next(ks), (B, objects_N, dim), jnp.float32)
    p_i = jax.random.normal(next(ks), (B, N_patch, dim), jnp.float32)

    W = pack_params(P, objects_N, dim)                       # one-time weight packing
    o_out, p_out = attention_layer_forward(W, o_i, p_i, h, w)
    jax.block_until_ready((o_out, p_out))

    o_ref, p_ref = reference_forward(P, o_i, p_i, h, w)
    jax.block_until_ready((o_ref, p_ref))

    assert o_out.shape == (B, objects_N, dim) and p_out.shape == (B, N_patch, dim)
    err_o = float(jnp.max(jnp.abs(o_out - o_ref)))
    err_p = float(jnp.max(jnp.abs(p_out - p_ref)))
    # Tolerance accounts for bf16 MXU operands (f32 accumulation), EUP approximate
    # reciprocals and the tanh-approx GELU vs. the pure-f32/exact-erf reference: combined
    # error is expected at the ~1e-3..1e-2 level, while genuine layout / residual bugs
    # produce O(0.1+) errors and are still caught.
    assert err_o < 3e-2 and err_p < 3e-2, (err_o, err_p)

    print("KERNEL_OK")
</pallas_src>

<mosaic_0001>
module attributes {stable_mosaic.version = 11 : i64} {
  func.func @attention_layer_kernel(%arg0: i32, %arg1: memref<1x8x128xf32, #tpu.memory_space<vmem>>, %arg2: memref<1x16x128xf32, #tpu.memory_space<vmem>>, %arg3: memref<128x1536xbf16, #tpu.memory_space<vmem>>, %arg4: memref<16x128xf32, #tpu.memory_space<vmem>>, %arg5: memref<8x8xf32, #tpu.memory_space<vmem>>, %arg6: memref<8x128xf32, #tpu.memory_space<vmem>>, %arg7: memref<1x8x128xf32, #tpu.memory_space<vmem>>, %arg8: memref<1x16x128xf32, #tpu.memory_space<vmem>>) attributes {dimension_semantics = [#tpu.dimension_semantics<parallel>], iteration_bounds = array<i64: 2>, scalar_prefetch = 0 : i64, scratch_operands = 0 : i64, tpu.core_type = #tpu.core_type<tc>, window_params = [{transform_indices = @transform_0, window_bounds = array<i64: 1, 8, 128>}, {transform_indices = @transform_1, window_bounds = array<i64: 1, 16, 128>}, {pipeline_mode = #tpu.pipeline_mode<synchronous>, transform_indices = @transform_2, window_bounds = array<i64: 128, 1536>}, {pipeline_mode = #tpu.pipeline_mode<synchronous>, transform_indices = @transform_3, window_bounds = array<i64: 16, 128>}, {pipeline_mode = #tpu.pipeline_mode<synchronous>, transform_indices = @transform_4, window_bounds = array<i64: 8, 8>}, {pipeline_mode = #tpu.pipeline_mode<synchronous>, transform_indices = @transform_5, window_bounds = array<i64: 8, 128>}, {transform_indices = @transform_6, window_bounds = array<i64: 1, 8, 128>}, {transform_indices = @transform_7, window_bounds = array<i64: 1, 16, 128>}]} {
    %c0 = arith.constant 0 : index
    %c0_0 = arith.constant 0 : index
    %c0_1 = arith.constant 0 : index
    %0 = vector.load %arg1[%c0, %c0_0, %c0_1] : memref<1x8x128xf32, #tpu.memory_space<vmem>>, vector<1x8x128xf32>
    %1 = vector.shape_cast %0 : vector<1x8x128xf32> to vector<8x128xf32>
    %c0_2 = arith.constant 0 : index
    %c0_3 = arith.constant 0 : index
    %c0_4 = arith.constant 0 : index
    %2 = vector.load %arg2[%c0_2, %c0_3, %c0_4] : memref<1x16x128xf32, #tpu.memory_space<vmem>>, vector<1x16x128xf32>
    %3 = vector.shape_cast %2 : vector<1x16x128xf32> to vector<16x128xf32>
    %c0_5 = arith.constant 0 : index
    %c0_6 = arith.constant 0 : index
    %4 = vector.load %arg4[%c0_5, %c0_6] : memref<16x128xf32, #tpu.memory_space<vmem>>, vector<1x128xf32>
    %c1 = arith.constant 1 : index
    %c0_7 = arith.constant 0 : index
    %5 = vector.load %arg4[%c1, %c0_7] : memref<16x128xf32, #tpu.memory_space<vmem>>, vector<1x128xf32>
    %cst = arith.constant dense<0.000000e+00> : vector<16xf32>
    %6 = vector.multi_reduction <add>, %3, %cst [1] : vector<16x128xf32> to vector<16xf32>
    %7 = vector.shape_cast %6 : vector<16xf32> to vector<16x1xf32>
    %cst_8 = arith.constant 3.125000e-02 : f32
    %8 = vector.broadcast %cst_8 : f32 to vector<16x1xf32>
    %9 = arith.mulf %7, %8 : vector<16x1xf32>
    %10 = arith.mulf %3, %3 : vector<16x128xf32>
    %cst_9 = arith.constant dense<0.000000e+00> : vector<16xf32>
    %11 = vector.multi_reduction <add>, %10, %cst_9 [1] : vector<16x128xf32> to vector<16xf32>
    %12 = vector.shape_cast %11 : vector<16xf32> to vector<16x1xf32>
    %cst_10 = arith.constant 3.125000e-02 : f32
    %13 = vector.broadcast %cst_10 : f32 to vector<16x1xf32>
    %14 = arith.mulf %12, %13 : vector<16x1xf32>
    %15 = arith.mulf %9, %9 : vector<16x1xf32>
    %16 = arith.subf %14, %15 : vector<16x1xf32>
    %17 = vector.broadcast %9 : vector<16x1xf32> to vector<16x128xf32>
    %18 = arith.subf %3, %17 : vector<16x128xf32>
    %cst_11 = arith.constant 9.99999974E-6 : f32
    %19 = vector.broadcast %cst_11 : f32 to vector<16x1xf32>
    %20 = arith.addf %16, %19 : vector<16x1xf32>
    %21 = math.rsqrt %20 : vector<16x1xf32>
    %22 = vector.broadcast %21 : vector<16x1xf32> to vector<16x128xf32>
    %23 = arith.mulf %18, %22 : vector<16x128xf32>
    %24 = vector.broadcast %4 : vector<1x128xf32> to vector<16x128xf32>
    %25 = arith.mulf %23, %24 : vector<16x128xf32>
    %26 = vector.broadcast %5 : vector<1x128xf32> to vector<16x128xf32>
    %27 = arith.addf %25, %26 : vector<16x128xf32>
    %c2 = arith.constant 2 : index
    %c0_12 = arith.constant 0 : index
    %28 = vector.load %arg4[%c2, %c0_12] : memref<16x128xf32, #tpu.memory_space<vmem>>, vector<1x128xf32>
    %c3 = arith.constant 3 : index
    %c0_13 = arith.constant 0 : index
    %29 = vector.load %arg4[%c3, %c0_13] : memref<16x128xf32, #tpu.memory_space<vmem>>, vector<1x128xf32>
    %cst_14 = arith.constant dense<0.000000e+00> : vector<8xf32>
    %30 = vector.multi_reduction <add>, %1, %cst_14 [1] : vector<8x128xf32> to vector<8xf32>
    %31 = vector.shape_cast %30 : vector<8xf32> to vector<8x1xf32>
    %cst_15 = arith.constant 3.125000e-02 : f32
    %32 = vector.broadcast %cst_15 : f32 to vector<8x1xf32>
    %33 = arith.mulf %31, %32 : vector<8x1xf32>
    %34 = arith.mulf %1, %1 : vector<8x128xf32>
    %cst_16 = arith.constant dense<0.000000e+00> : vector<8xf32>
    %35 = vector.multi_reduction <add>, %34, %cst_16 [1] : vector<8x128xf32> to vector<8xf32>
    %36 = vector.shape_cast %35 : vector<8xf32> to vector<8x1xf32>
    %cst_17 = arith.constant 3.125000e-02 : f32
    %37 = vector.broadcast %cst_17 : f32 to vector<8x1xf32>
    %38 = arith.mulf %36, %37 : vector<8x1xf32>
    %39 = arith.mulf %33, %33 : vector<8x1xf32>
    %40 = arith.subf %38, %39 : vector<8x1xf32>
    %41 = vector.broadcast %33 : vector<8x1xf32> to vector<8x128xf32>
    %42 = arith.subf %1, %41 : vector<8x128xf32>
    %cst_18 = arith.constant 9.99999974E-6 : f32
    %43 = vector.broadcast %cst_18 : f32 to vector<8x1xf32>
    %44 = arith.addf %40, %43 : vector<8x1xf32>
    %45 = math.rsqrt %44 : vector<8x1xf32>
    %46 = vector.broadcast %45 : vector<8x1xf32> to vector<8x128xf32>
    %47 = arith.mulf %42, %46 : vector<8x128xf32>
    %48 = vector.broadcast %28 : vector<1x128xf32> to vector<8x128xf32>
    %49 = arith.mulf %47, %48 : vector<8x128xf32>
    %50 = vector.broadcast %29 : vector<1x128xf32> to vector<8x128xf32>
    %51 = arith.addf %49, %50 : vector<8x128xf32>
    %52 = arith.truncf %27 : vector<16x128xf32> to vector<16x128xbf16>
    %c0_19 = arith.constant 0 : index
    %c128 = arith.constant 128 : index
    %53 = vector.load %arg3[%c0_19, %c128] : memref<128x1536xbf16, #tpu.memory_space<vmem>>, vector<128x384xbf16>
    %cst_20 = arith.constant dense<0.000000e+00> : vector<16x384xf32>
    %54 = tpu.matmul %52, %53, %cst_20 {dimension_numbers = #tpu.dot_dimension_numbers<[1], [0], [0], [1], [0, 0, 1, 1], [], []>} : vector<16x128xbf16>, vector<128x384xbf16>, vector<16x384xf32> -> vector<16x384xf32>
    %55 = vector.extract_strided_slice %54 {offsets = [0, 0], sizes = [16, 128], strides = [1, 1]} : vector<16x384xf32> to vector<16x128xf32>
    %56 = vector.extract_strided_slice %54 {offsets = [0, 128], sizes = [16, 128], strides = [1, 1]} : vector<16x384xf32> to vector<16x128xf32>
    %57 = vector.extract_strided_slice %54 {offsets = [0, 256], sizes = [16, 128], strides = [1, 1]} : vector<16x384xf32> to vector<16x128xf32>
    %58 = arith.truncf %51 : vector<8x128xf32> to vector<8x128xbf16>
    %c0_21 = arith.constant 0 : index
    %c0_22 = arith.constant 0 : index
    %59 = vector.load %arg3[%c0_21, %c0_22] : memref<128x1536xbf16, #tpu.memory_space<vmem>>, vector<128x128xbf16>
    %cst_23 = arith.constant dense<0.000000e+00> : vector<8x128xf32>
    %60 = tpu.matmul %58, %59, %cst_23 {dimension_numbers = #tpu.dot_dimension_numbers<[1], [0], [0], [1], [0, 0, 1, 1], [], []>} : vector<8x128xbf16>, vector<128x128xbf16>, vector<8x128xf32> -> vector<8x128xf32>
    %61 = arith.truncf %60 : vector<8x128xf32> to vector<8x128xbf16>
    %62 = arith.truncf %55 : vector<16x128xf32> to vector<16x128xbf16>
    %63 = arith.truncf %56 : vector<16x128xf32> to vector<16x128xbf16>
    %cst_24 = arith.constant dense<0.000000e+00> : vector<8x16xf32>
    %64 = tpu.matmul %61, %62, %cst_24 {dimension_numbers = #tpu.dot_dimension_numbers<[1], [1], [0], [0], [0, 0, 1, 0], [], []>} : vector<8x128xbf16>, vector<16x128xbf16>, vector<8x16xf32> -> vector<8x16xf32>
    %cst_25 = arith.constant dense<0xFF800000> : vector<8xf32>
    %65 = vector.multi_reduction <maximumf>, %64, %cst_25 [1] : vector<8x16xf32> to vector<8xf32>
    %66 = vector.shape_cast %65 : vector<8xf32> to vector<8x1xf32>
    %67 = vector.broadcast %66 : vector<8x1xf32> to vector<8x16xf32>
    %68 = arith.subf %64, %67 : vector<8x16xf32>
    %69 = math.exp %68 : vector<8x16xf32>
    %cst_26 = arith.constant dense<0.000000e+00> : vector<8xf32>
    %70 = vector.multi_reduction <add>, %69, %cst_26 [1] : vector<8x16xf32> to vector<8xf32>
    %71 = vector.shape_cast %70 : vector<8xf32> to vector<8x1xf32>
    %72 = tpu.reciprocal %71 {approx = true} : vector<8x1xf32> -> vector<8x1xf32>
    %73 = vector.broadcast %72 : vector<8x1xf32> to vector<8x16xf32>
    %74 = arith.mulf %69, %73 : vector<8x16xf32>
    %75 = arith.truncf %74 : vector<8x16xf32> to vector<8x16xbf16>
    %cst_27 = arith.constant dense<0.000000e+00> : vector<8x128xf32>
    %76 = tpu.matmul %75, %63, %cst_27 {dimension_numbers = #tpu.dot_dimension_numbers<[1], [0], [0], [1], [0, 0, 1, 1], [], []>} : vector<8x16xbf16>, vector<16x128xbf16>, vector<8x128xf32> -> vector<8x128xf32>
    %77 = arith.truncf %76 : vector<8x128xf32> to vector<8x128xbf16>
    %c0_28 = arith.constant 0 : index
    %c512 = arith.constant 512 : index
    %78 = vector.load %arg3[%c0_28, %c512] : memref<128x1536xbf16, #tpu.memory_space<vmem>>, vector<128x128xbf16>
    %cst_29 = arith.constant dense<0.000000e+00> : vector<8x128xf32>
    %79 = tpu.matmul %77, %78, %cst_29 {dimension_numbers = #tpu.dot_dimension_numbers<[1], [0], [0], [1], [0, 0, 1, 1], [], []>} : vector<8x128xbf16>, vector<128x128xbf16>, vector<8x128xf32> -> vector<8x128xf32>
    %80 = arith.addf %79, %51 : vector<8x128xf32>
    %c4 = arith.constant 4 : index
    %c0_30 = arith.constant 0 : index
    %81 = vector.load %arg4[%c4, %c0_30] : memref<16x128xf32, #tpu.memory_space<vmem>>, vector<1x128xf32>
    %c5 = arith.constant 5 : index
    %c0_31 = arith.constant 0 : index
    %82 = vector.load %arg4[%c5, %c0_31] : memref<16x128xf32, #tpu.memory_space<vmem>>, vector<1x128xf32>
    %cst_32 = arith.constant dense<0.000000e+00> : vector<8xf32>
    %83 = vector.multi_reduction <add>, %80, %cst_32 [1] : vector<8x128xf32> to vector<8xf32>
    %84 = vector.shape_cast %83 : vector<8xf32> to vector<8x1xf32>
    %cst_33 = arith.constant 3.125000e-02 : f32
    %85 = vector.broadcast %cst_33 : f32 to vector<8x1xf32>
    %86 = arith.mulf %84, %85 : vector<8x1xf32>
    %87 = arith.mulf %80, %80 : vector<8x128xf32>
    %cst_34 = arith.constant dense<0.000000e+00> : vector<8xf32>
    %88 = vector.multi_reduction <add>, %87, %cst_34 [1] : vector<8x128xf32> to vector<8xf32>
    %89 = vector.shape_cast %88 : vector<8xf32> to vector<8x1xf32>
    %cst_35 = arith.constant 3.125000e-02 : f32
    %90 = vector.broadcast %cst_35 : f32 to vector<8x1xf32>
    %91 = arith.mulf %89, %90 : vector<8x1xf32>
    %92 = arith.mulf %86, %86 : vector<8x1xf32>
    %93 = arith.subf %91, %92 : vector<8x1xf32>
    %94 = vector.broadcast %86 : vector<8x1xf32> to vector<8x128xf32>
    %95 = arith.subf %80, %94 : vector<8x128xf32>
    %cst_36 = arith.constant 9.99999997E-7 : f32
    %96 = vector.broadcast %cst_36 : f32 to vector<8x1xf32>
    %97 = arith.addf %93, %96 : vector<8x1xf32>
    %98 = math.rsqrt %97 : vector<8x1xf32>
    %99 = vector.broadcast %98 : vector<8x1xf32> to vector<8x128xf32>
    %100 = arith.mulf %95, %99 : vector<8x128xf32>
    %101 = vector.broadcast %81 : vector<1x128xf32> to vector<8x128xf32>
    %102 = arith.mulf %100, %101 : vector<8x128xf32>
    %103 = vector.broadcast %82 : vector<1x128xf32> to vector<8x128xf32>
    %104 = arith.addf %102, %103 : vector<8x128xf32>
    %105 = arith.addf %51, %104 : vector<8x128xf32>
    %c0_37 = arith.constant 0 : index
    %c0_38 = arith.constant 0 : index
    %106 = vector.load %arg5[%c0_37, %c0_38] : memref<8x8xf32, #tpu.memory_space<vmem>>, vector<8x8xf32>
    %c0_39 = arith.constant 0 : index
    %c0_40 = arith.constant 0 : index
    %107 = vector.load %arg6[%c0_39, %c0_40] : memref<8x128xf32, #tpu.memory_space<vmem>>, vector<8x128xf32>
    %cst_41 = arith.constant dense<0.000000e+00> : vector<8x128xf32>
    %108 = tpu.matmul %106, %105, %cst_41 {dimension_numbers = #tpu.dot_dimension_numbers<[1], [0], [0], [1], [0, 0, 1, 1], [], []>} : vector<8x8xf32>, vector<8x128xf32>, vector<8x128xf32> -> vector<8x128xf32>
    %109 = arith.addf %108, %107 : vector<8x128xf32>
    %110 = arith.addf %105, %109 : vector<8x128xf32>
    %c0_42 = arith.constant 0 : index
    %c640 = arith.constant 640 : index
    %111 = vector.load %arg3[%c0_42, %c640] : memref<128x1536xbf16, #tpu.memory_space<vmem>>, vector<128x128xbf16>
    %c6 = arith.constant 6 : index
    %c0_43 = arith.constant 0 : index
    %112 = vector.load %arg4[%c6, %c0_43] : memref<16x128xf32, #tpu.memory_space<vmem>>, vector<1x128xf32>
    %c0_44 = arith.constant 0 : index
    %c768 = arith.constant 768 : index
    %113 = vector.load %arg3[%c0_44, %c768] : memref<128x1536xbf16, #tpu.memory_space<vmem>>, vector<128x128xbf16>
    %c7 = arith.constant 7 : index
    %c0_45 = arith.constant 0 : index
    %114 = vector.load %arg4[%c7, %c0_45] : memref<16x128xf32, #tpu.memory_space<vmem>>, vector<1x128xf32>
    %115 = arith.truncf %110 : vector<8x128xf32> to vector<8x128xbf16>
    %cst_46 = arith.constant dense<0.000000e+00> : vector<8x128xf32>
    %116 = tpu.matmul %115, %111, %cst_46 {dimension_numbers = #tpu.dot_dimension_numbers<[1], [0], [0], [1], [0, 0, 1, 1], [], []>} : vector<8x128xbf16>, vector<128x128xbf16>, vector<8x128xf32> -> vector<8x128xf32>
    %117 = vector.broadcast %112 : vector<1x128xf32> to vector<8x128xf32>
    %118 = arith.addf %116, %117 : vector<8x128xf32>
    %cst_47 = arith.constant 5.000000e-01 : f32
    %119 = vector.broadcast %cst_47 : f32 to vector<8x128xf32>
    %120 = arith.mulf %119, %118 : vector<8x128xf32>
    %cst_48 = arith.constant 4.471500e-02 : f32
    %121 = vector.broadcast %cst_48 : f32 to vector<8x128xf32>
    %122 = arith.mulf %121, %118 : vector<8x128xf32>
    %123 = arith.mulf %122, %118 : vector<8x128xf32>
    %124 = arith.mulf %123, %118 : vector<8x128xf32>
    %125 = arith.addf %118, %124 : vector<8x128xf32>
    %cst_49 = arith.constant 0.797884583 : f32
    %126 = vector.broadcast %cst_49 : f32 to vector<8x128xf32>
    %127 = arith.mulf %126, %125 : vector<8x128xf32>
    %128 = math.tanh %127 : vector<8x128xf32>
    %cst_50 = arith.constant 1.000000e+00 : f32
    %129 = vector.broadcast %cst_50 : f32 to vector<8x128xf32>
    %130 = arith.addf %129, %128 : vector<8x128xf32>
    %131 = arith.mulf %120, %130 : vector<8x128xf32>
    %132 = arith.truncf %131 : vector<8x128xf32> to vector<8x128xbf16>
    %cst_51 = arith.constant dense<0.000000e+00> : vector<8x128xf32>
    %133 = tpu.matmul %132, %113, %cst_51 {dimension_numbers = #tpu.dot_dimension_numbers<[1], [0], [0], [1], [0, 0, 1, 1], [], []>} : vector<8x128xbf16>, vector<128x128xbf16>, vector<8x128xf32> -> vector<8x128xf32>
    %134 = vector.broadcast %114 : vector<1x128xf32> to vector<8x128xf32>
    %135 = arith.addf %133, %134 : vector<8x128xf32>
    %136 = arith.addf %110, %135 : vector<8x128xf32>
    %137 = vector.shape_cast %136 : vector<8x128xf32> to vector<1x8x128xf32>
    %c0_52 = arith.constant 0 : index
    %c0_53 = arith.constant 0 : index
    %c0_54 = arith.constant 0 : index
    %138 = vector.load %arg7[%c0_52, %c0_53, %c0_54] : memref<1x8x128xf32, #tpu.memory_space<vmem>>, vector<1x8x128xf32>
    tpu.vector_store %arg7[%c0_52, %c0_53, %c0_54], %137 {strides = array<i32>} : memref<1x8x128xf32, #tpu.memory_space<vmem>>, vector<1x8x128xf32>,
    %c8 = arith.constant 8 : index
    %c0_55 = arith.constant 0 : index
    %139 = vector.load %arg4[%c8, %c0_55] : memref<16x128xf32, #tpu.memory_space<vmem>>, vector<1x128xf32>
    %c9 = arith.constant 9 : index
    %c0_56 = arith.constant 0 : index
    %140 = vector.load %arg4[%c9, %c0_56] : memref<16x128xf32, #tpu.memory_space<vmem>>, vector<1x128xf32>
    %cst_57 = arith.constant dense<0.000000e+00> : vector<8xf32>
    %141 = vector.multi_reduction <add>, %136, %cst_57 [1] : vector<8x128xf32> to vector<8xf32>
    %142 = vector.shape_cast %141 : vector<8xf32> to vector<8x1xf32>
    %cst_58 = arith.constant 3.125000e-02 : f32
    %143 = vector.broadcast %cst_58 : f32 to vector<8x1xf32>
    %144 = arith.mulf %142, %143 : vector<8x1xf32>
    %145 = arith.mulf %136, %136 : vector<8x128xf32>
    %cst_59 = arith.constant dense<0.000000e+00> : vector<8xf32>
    %146 = vector.multi_reduction <add>, %145, %cst_59 [1] : vector<8x128xf32> to vector<8xf32>
    %147 = vector.shape_cast %146 : vector<8xf32> to vector<8x1xf32>
    %cst_60 = arith.constant 3.125000e-02 : f32
    %148 = vector.broadcast %cst_60 : f32 to vector<8x1xf32>
    %149 = arith.mulf %147, %148 : vector<8x1xf32>
    %150 = arith.mulf %144, %144 : vector<8x1xf32>
    %151 = arith.subf %149, %150 : vector<8x1xf32>
    %152 = vector.broadcast %144 : vector<8x1xf32> to vector<8x128xf32>
    %153 = arith.subf %136, %152 : vector<8x128xf32>
    %cst_61 = arith.constant 9.99999974E-6 : f32
    %154 = vector.broadcast %cst_61 : f32 to vector<8x1xf32>
    %155 = arith.addf %151, %154 : vector<8x1xf32>
    %156 = math.rsqrt %155 : vector<8x1xf32>
    %157 = vector.broadcast %156 : vector<8x1xf32> to vector<8x128xf32>
    %158 = arith.mulf %153, %157 : vector<8x128xf32>
    %159 = vector.broadcast %139 : vector<1x128xf32> to vector<8x128xf32>
    %160 = arith.mulf %158, %159 : vector<8x128xf32>
    %161 = vector.broadcast %140 : vector<1x128xf32> to vector<8x128xf32>
    %162 = arith.addf %160, %161 : vector<8x128xf32>
    %163 = arith.truncf %162 : vector<8x128xf32> to vector<8x128xbf16>
    %c0_62 = arith.constant 0 : index
    %c896 = arith.constant 896 : index
    %164 = vector.load %arg3[%c0_62, %c896] : memref<128x1536xbf16, #tpu.memory_space<vmem>>, vector<128x256xbf16>
    %cst_63 = arith.constant dense<0.000000e+00> : vector<8x256xf32>
    %165 = tpu.matmul %163, %164, %cst_63 {dimension_numbers = #tpu.dot_dimension_numbers<[1], [0], [0], [1], [0, 0, 1, 1], [], []>} : vector<8x128xbf16>, vector<128x256xbf16>, vector<8x256xf32> -> vector<8x256xf32>
    %166 = vector.extract_strided_slice %165 {offsets = [0, 0], sizes = [8, 128], strides = [1, 1]} : vector<8x256xf32> to vector<8x128xf32>
    %167 = vector.extract_strided_slice %165 {offsets = [0, 128], sizes = [8, 128], strides = [1, 1]} : vector<8x256xf32> to vector<8x128xf32>
    %168 = arith.truncf %57 : vector<16x128xf32> to vector<16x128xbf16>
    %169 = arith.truncf %166 : vector<8x128xf32> to vector<8x128xbf16>
    %170 = arith.truncf %167 : vector<8x128xf32> to vector<8x128xbf16>
    %cst_64 = arith.constant dense<0.000000e+00> : vector<16x8xf32>
    %171 = tpu.matmul %168, %169, %cst_64 {dimension_numbers = #tpu.dot_dimension_numbers<[1], [1], [0], [0], [0, 0, 1, 0], [], []>} : vector<16x128xbf16>, vector<8x128xbf16>, vector<16x8xf32> -> vector<16x8xf32>
    %cst_65 = arith.constant dense<0xFF800000> : vector<16xf32>
    %172 = vector.multi_reduction <maximumf>, %171, %cst_65 [1] : vector<16x8xf32> to vector<16xf32>
    %173 = vector.shape_cast %172 : vector<16xf32> to vector<16x1xf32>
    %174 = vector.broadcast %173 : vector<16x1xf32> to vector<16x8xf32>
    %175 = arith.subf %171, %174 : vector<16x8xf32>
    %176 = math.exp %175 : vector<16x8xf32>
    %cst_66 = arith.constant dense<0.000000e+00> : vector<16xf32>
    %177 = vector.multi_reduction <add>, %176, %cst_66 [1] : vector<16x8xf32> to vector<16xf32>
    %178 = vector.shape_cast %177 : vector<16xf32> to vector<16x1xf32>
    %179 = tpu.reciprocal %178 {approx = true} : vector<16x1xf32> -> vector<16x1xf32>
    %180 = vector.broadcast %179 : vector<16x1xf32> to vector<16x8xf32>
    %181 = arith.mulf %176, %180 : vector<16x8xf32>
    %182 = arith.truncf %181 : vector<16x8xf32> to vector<16x8xbf16>
    %cst_67 = arith.constant dense<0.000000e+00> : vector<16x128xf32>
    %183 = tpu.matmul %182, %170, %cst_67 {dimension_numbers = #tpu.dot_dimension_numbers<[1], [0], [0], [1], [0, 0, 1, 1], [], []>} : vector<16x8xbf16>, vector<8x128xbf16>, vector<16x128xf32> -> vector<16x128xf32>
    %184 = arith.truncf %183 : vector<16x128xf32> to vector<16x128xbf16>
    %c0_68 = arith.constant 0 : index
    %c1152 = arith.constant 1152 : index
    %185 = vector.load %arg3[%c0_68, %c1152] : memref<128x1536xbf16, #tpu.memory_space<vmem>>, vector<128x128xbf16>
    %cst_69 = arith.constant dense<0.000000e+00> : vector<16x128xf32>
    %186 = tpu.matmul %184, %185, %cst_69 {dimension_numbers = #tpu.dot_dimension_numbers<[1], [0], [0], [1], [0, 0, 1, 1], [], []>} : vector<16x128xbf16>, vector<128x128xbf16>, vector<16x128xf32> -> vector<16x128xf32>
    %187 = arith.addf %186, %27 : vector<16x128xf32>
    %c10 = arith.constant 10 : index
    %c0_70 = arith.constant 0 : index
    %188 = vector.load %arg4[%c10, %c0_70] : memref<16x128xf32, #tpu.memory_space<vmem>>, vector<1x128xf32>
    %c11 = arith.constant 11 : index
    %c0_71 = arith.constant 0 : index
    %189 = vector.load %arg4[%c11, %c0_71] : memref<16x128xf32, #tpu.memory_space<vmem>>, vector<1x128xf32>
    %cst_72 = arith.constant dense<0.000000e+00> : vector<16xf32>
    %190 = vector.multi_reduction <add>, %187, %cst_72 [1] : vector<16x128xf32> to vector<16xf32>
    %191 = vector.shape_cast %190 : vector<16xf32> to vector<16x1xf32>
    %cst_73 = arith.constant 3.125000e-02 : f32
    %192 = vector.broadcast %cst_73 : f32 to vector<16x1xf32>
    %193 = arith.mulf %191, %192 : vector<16x1xf32>
    %194 = arith.mulf %187, %187 : vector<16x128xf32>
    %cst_74 = arith.constant dense<0.000000e+00> : vector<16xf32>
    %195 = vector.multi_reduction <add>, %194, %cst_74 [1] : vector<16x128xf32> to vector<16xf32>
    %196 = vector.shape_cast %195 : vector<16xf32> to vector<16x1xf32>
    %cst_75 = arith.constant 3.125000e-02 : f32
    %197 = vector.broadcast %cst_75 : f32 to vector<16x1xf32>
    %198 = arith.mulf %196, %197 : vector<16x1xf32>
    %199 = arith.mulf %193, %193 : vector<16x1xf32>
    %200 = arith.subf %198, %199 : vector<16x1xf32>
    %201 = vector.broadcast %193 : vector<16x1xf32> to vector<16x128xf32>
    %202 = arith.subf %187, %201 : vector<16x128xf32>
    %cst_76 = arith.constant 9.99999997E-7 : f32
    %203 = vector.broadcast %cst_76 : f32 to vector<16x1xf32>
    %204 = arith.addf %200, %203 : vector<16x1xf32>
    %205 = math.rsqrt %204 : vector<16x1xf32>
    %206 = vector.broadcast %205 : vector<16x1xf32> to vector<16x128xf32>
    %207 = arith.mulf %202, %206 : vector<16x128xf32>
    %208 = vector.broadcast %188 : vector<1x128xf32> to vector<16x128xf32>
    %209 = arith.mulf %207, %208 : vector<16x128xf32>
    %210 = vector.broadcast %189 : vector<1x128xf32> to vector<16x128xf32>
    %211 = arith.addf %209, %210 : vector<16x128xf32>
    %212 = arith.addf %27, %211 : vector<16x128xf32>
    %cst_77 = arith.constant 2.000000e+00 : f32
    %213 = vector.broadcast %cst_77 : f32 to vector<16x128xf32>
    %214 = arith.mulf %213, %212 : vector<16x128xf32>
    %c0_78 = arith.constant 0 : index
    %c1280 = arith.constant 1280 : index
    %215 = vector.load %arg3[%c0_78, %c1280] : memref<128x1536xbf16, #tpu.memory_space<vmem>>, vector<128x128xbf16>
    %c12 = arith.constant 12 : index
    %c0_79 = arith.constant 0 : index
    %216 = vector.load %arg4[%c12, %c0_79] : memref<16x128xf32, #tpu.memory_space<vmem>>, vector<1x128xf32>
    %c0_80 = arith.constant 0 : index
    %c1408 = arith.constant 1408 : index
    %217 = vector.load %arg3[%c0_80, %c1408] : memref<128x1536xbf16, #tpu.memory_space<vmem>>, vector<128x128xbf16>
    %c13 = arith.constant 13 : index
    %c0_81 = arith.constant 0 : index
    %218 = vector.load %arg4[%c13, %c0_81] : memref<16x128xf32, #tpu.memory_space<vmem>>, vector<1x128xf32>
    %219 = arith.truncf %212 : vector<16x128xf32> to vector<16x128xbf16>
    %cst_82 = arith.constant dense<0.000000e+00> : vector<16x128xf32>
    %220 = tpu.matmul %219, %215, %cst_82 {dimension_numbers = #tpu.dot_dimension_numbers<[1], [0], [0], [1], [0, 0, 1, 1], [], []>} : vector<16x128xbf16>, vector<128x128xbf16>, vector<16x128xf32> -> vector<16x128xf32>
    %221 = vector.broadcast %216 : vector<1x128xf32> to vector<16x128xf32>
    %222 = arith.addf %220, %221 : vector<16x128xf32>
    %cst_83 = arith.constant 5.000000e-01 : f32
    %223 = vector.broadcast %cst_83 : f32 to vector<16x128xf32>
    %224 = arith.mulf %223, %222 : vector<16x128xf32>
    %cst_84 = arith.constant 4.471500e-02 : f32
    %225 = vector.broadcast %cst_84 : f32 to vector<16x128xf32>
    %226 = arith.mulf %225, %222 : vector<16x128xf32>
    %227 = arith.mulf %226, %222 : vector<16x128xf32>
    %228 = arith.mulf %227, %222 : vector<16x128xf32>
    %229 = arith.addf %222, %228 : vector<16x128xf32>
    %cst_85 = arith.constant 0.797884583 : f32
    %230 = vector.broadcast %cst_85 : f32 to vector<16x128xf32>
    %231 = arith.mulf %230, %229 : vector<16x128xf32>
    %232 = math.tanh %231 : vector<16x128xf32>
    %cst_86 = arith.constant 1.000000e+00 : f32
    %233 = vector.broadcast %cst_86 : f32 to vector<16x128xf32>
    %234 = arith.addf %233, %232 : vector<16x128xf32>
    %235 = arith.mulf %224, %234 : vector<16x128xf32>
    %236 = arith.truncf %235 : vector<16x128xf32> to vector<16x128xbf16>
    %cst_87 = arith.constant dense<0.000000e+00> : vector<16x128xf32>
    %237 = tpu.matmul %236, %217, %cst_87 {dimension_numbers = #tpu.dot_dimension_numbers<[1], [0], [0], [1], [0, 0, 1, 1], [], []>} : vector<16x128xbf16>, vector<128x128xbf16>, vector<16x128xf32> -> vector<16x128xf32>
    %238 = vector.broadcast %218 : vector<1x128xf32> to vector<16x128xf32>
    %239 = arith.addf %237, %238 : vector<16x128xf32>
    %240 = arith.addf %214, %239 : vector<16x128xf32>
    %241 = vector.shape_cast %240 : vector<16x128xf32> to vector<1x16x128xf32>
    %c0_88 = arith.constant 0 : index
    %c0_89 = arith.constant 0 : index
    %c0_90 = arith.constant 0 : index
    %242 = vector.load %arg8[%c0_88, %c0_89, %c0_90] : memref<1x16x128xf32, #tpu.memory_space<vmem>>, vector<1x16x128xf32>
    tpu.vector_store %arg8[%c0_88, %c0_89, %c0_90], %241 {strides = array<i32>} : memref<1x16x128xf32, #tpu.memory_space<vmem>>, vector<1x16x128xf32>,
    return
  }
  func.func @transform_0(%arg0: i32) -> (i32, i32, i32) {
    %c0_i32 = arith.constant 0 : i32
    %c0_i32_0 = arith.constant 0 : i32
    %c0_i32_1 = arith.constant 0 : i32
    return %arg0, %c0_i32, %c0_i32_0 : i32, i32, i32
  }
  func.func @transform_1(%arg0: i32) -> (i32, i32, i32) {
    %c0_i32 = arith.constant 0 : i32
    %c0_i32_0 = arith.constant 0 : i32
    %c0_i32_1 = arith.constant 0 : i32
    return %arg0, %c0_i32, %c0_i32_0 : i32, i32, i32
  }
  func.func @transform_2(%arg0: i32) -> (i32, i32) {
    %c0_i32 = arith.constant 0 : i32
    %c0_i32_0 = arith.constant 0 : i32
    %c0_i32_1 = arith.constant 0 : i32
    return %c0_i32, %c0_i32_0 : i32, i32
  }
  func.func @transform_3(%arg0: i32) -> (i32, i32) {
    %c0_i32 = arith.constant 0 : i32
    %c0_i32_0 = arith.constant 0 : i32
    %c0_i32_1 = arith.constant 0 : i32
    return %c0_i32, %c0_i32_0 : i32, i32
  }
  func.func @transform_4(%arg0: i32) -> (i32, i32) {
    %c0_i32 = arith.constant 0 : i32
    %c0_i32_0 = arith.constant 0 : i32
    %c0_i32_1 = arith.constant 0 : i32
    return %c0_i32, %c0_i32_0 : i32, i32
  }
  func.func @transform_5(%arg0: i32) -> (i32, i32) {
    %c0_i32 = arith.constant 0 : i32
    %c0_i32_0 = arith.constant 0 : i32
    %c0_i32_1 = arith.constant 0 : i32
    return %c0_i32, %c0_i32_0 : i32, i32
  }
  func.func @transform_6(%arg0: i32) -> (i32, i32, i32) {
    %c0_i32 = arith.constant 0 : i32
    %c0_i32_0 = arith.constant 0 : i32
    %c0_i32_1 = arith.constant 0 : i32
    return %arg0, %c0_i32, %c0_i32_0 : i32, i32, i32
  }
  func.func @transform_7(%arg0: i32) -> (i32, i32, i32) {
    %c0_i32 = arith.constant 0 : i32
    %c0_i32_0 = arith.constant 0 : i32
    %c0_i32_1 = arith.constant 0 : i32
    return %arg0, %c0_i32, %c0_i32_0 : i32, i32, i32
  }
}

</mosaic_0001>

<llo_original>
// kernel: tpu_custom_call.1
$region0: #{tpu_custom_call.1}
  #allocation0 [shape = 'u32[]', space=smem, size = 0x4, offset = 0x4, fixed_abs, tag = 'smem constant byte address 0x4 - core index']
  #allocation1 [shape = 'u32[144,128]{1,0:T(1,128)}', space=vmem, size = 0x12000, scoped, tag = 'internal scratch']
  %s0 = inlined_call_operand.hbm [shape: f32[2,8,128], index: 0, kind: input, shape index: {}]
  %s1 = inlined_call_operand.hbm [shape: f32[2,16,128], index: 1, kind: input, shape index: {}]
  %s2 = inlined_call_operand.hbm [shape: bf16[128,1536], index: 2, kind: input, shape index: {}]
  %s3 = inlined_call_operand.hbm [shape: f32[16,128], index: 3, kind: input, shape index: {}]
  %s4 = inlined_call_operand.vmem [shape: f32[8,8], index: 4, kind: input, shape index: {}]
  %s5 = inlined_call_operand.vmem [shape: f32[8,128], index: 5, kind: input, shape index: {}]
  %s6 = inlined_call_operand.hbm [shape: f32[2,8,128], index: 6, kind: output, shape index: {0}]
  %s7 = inlined_call_operand.hbm [shape: f32[2,16,128], index: 7, kind: output, shape index: {1}]
  %8 = xla_tuple %s6, %s7
  %s9 = sld [smem:[#allocation0]]
  $region81: #{tpu_custom_call.1} parent=0
    _
  %s11 = ssub.s32 1, %s9
  %s12 = scalar_select 0, %s11, %s9
  $region1: #{tpu_custom_call.1} parent=0
    #allocation2 [shape = 'u8[8192]{0}', space=vmem, size = 0x2000, scoped, tag = 'input window, operand 0']
    #allocation3 [shape = 's32[2]{0}', space=sflag, size = 0x8, scoped, tag = 'scoped memory for tpu_custom_call.1']
    #allocation4 [shape = 's32[2]{0}', space=sflag, size = 0x8, scoped, tag = 'scoped memory for tpu_custom_call.1']
    #allocation5 [shape = 'u8[16384]{0}', space=vmem, size = 0x4000, scoped, tag = 'input window, operand 1']
    #allocation6 [shape = 's32[2]{0}', space=sflag, size = 0x8, scoped, tag = 'scoped memory for tpu_custom_call.1']
    #allocation7 [shape = 'u8[393216]{0}', space=vmem, size = 0x60000, scoped, tag = 'input window, operand 2, single buffered']
    #allocation8 [shape = 'u8[8192]{0}', space=vmem, size = 0x2000, scoped, tag = 'input window, operand 3, single buffered']
    #allocation9 [shape = 's32[1]{0}', space=sflag, size = 0x4, scoped, tag = 'scoped memory for tpu_custom_call.1']
    #allocation10 [shape = 'u8[8192]{0}', space=vmem, size = 0x2000, scoped, tag = 'output window, operand 0']
    #allocation11 [shape = 'u8[16384]{0}', space=vmem, size = 0x4000, scoped, tag = 'output window, operand 1']
    #allocation12 [shape = 's32[2]{0}', space=sflag, size = 0x8, scoped, tag = 'scoped memory for tpu_custom_call.1']
    %13 = vsyncpa [#allocation3], 0
    %s14 = scalar_lea.sflag [#allocation3], 1
    %15 = vsyncpa %s14, 0
    %16 = vsyncpa [#allocation6], 0
    %s17 = scalar_lea.sflag [#allocation6], 1
    %18 = vsyncpa %s17, 0
    %19 = vsyncpa [#allocation9], 0
    %20 = vsyncpa [#allocation4], 0
    %s21 = scalar_lea.sflag [#allocation4], 1
    %22 = vsyncpa %s21, 0
    %23 = vsyncpa [#allocation12], 0
    %s24 = scalar_lea.sflag [#allocation12], 1
    %25 = vsyncpa %s24, 0
    loop: start=0, step=1, limit=4
    $region2: #{tpu_custom_call.1} parent=1 // loop_pre_header
      _
    $region3: #{tpu_custom_call.1} parent=1 // loop_header
      %s27 = sphi 0, %s31
      %p28 = scmp.ge.s32.totalorder %s27, 4
      %s37 = sphi 0, %s39
      %s40 = sphi 0, %s37
      %s41 = sphi 0, %s40
      %s57 = sphi 0, %s41
      %s63 = sphi 0, %s65
      %s66 = sphi 0, %s63
      %s67 = sphi 0, %s66
      %s83 = sphi 0, %s67
      %s87 = sphi 0, %s87
      %s89 = sphi 0, %s87
      %s90 = sphi 0, %s89
      %s104 = sphi 0, %s90
      %s108 = sphi 0, %s108
      %s110 = sphi 0, %s108
      %s111 = sphi 0, %s110
      %s125 = sphi 0, %s111
      %s129 = sphi 0, %s129
      %s131 = sphi 0, %s129
      %s132 = sphi 0, %s131
      %s146 = sphi 0, %s132
      %s150 = sphi 0, %s150
      %s152 = sphi 0, %s150
      %s153 = sphi 0, %s152
      %s167 = sphi 0, %s153
      %s173 = sphi 0, %s175
      %s176 = sphi 0, %s173
      %s177 = sphi 0, %s176
      %s193 = sphi 0, %s177
      %s199 = sphi 0, %s201
      %s202 = sphi 0, %s199
      %s203 = sphi 0, %s202
      %s219 = sphi 0, %s203
    $region4: #{tpu_custom_call.1} parent=1 // loop_header_branch
      %30 = sbr.rel (%p28) target = $region8
    $region5: #{tpu_custom_call.1} parent=1 // loop_body
      %s32 = ssub.s32 %s27, 1
      %s33 = ssub.s32 %s27, 2
      %s34 = sadd.s32 %s27, 1
      %s35 = ssub.s32 %s27, %s34
      %p36 = scmp.eq.s32.totalorder %s35, 0
      %s38 = sadd.s32 %s37, 1
      %s39 = scalar_select %p36, %s37, %s38
      %p42 = pneg %p36
      %p43 = scmp.eq.s32.totalorder %s27, 1
      %p44 = por %p42, %p43
      %p45 = scmp.ne.s32.totalorder %s37, %s40
      %p46 = scmp.eq.s32.totalorder %s27, 0
      %p47 = por %p45, %p46
      %p48 = scmp.ne.s32.totalorder %s37, %s40
      %p49 = scmp.eq.s32.totalorder %s32, 1
      %p50 = por %p48, %p49
      %p51 = scmp.ne.s32.totalorder %s40, %s41
      %p52 = scmp.eq.s32.totalorder %s32, 0
      %p53 = por %p51, %p52
      %p54 = scmp.ne.s32.totalorder %s40, %s41
      %p55 = scmp.eq.s32.totalorder %s33, 1
      %p56 = por %p54, %p55
      %p58 = scmp.ne.s32.totalorder %s41, %s57
      %p59 = scmp.eq.s32.totalorder %s33, 0
      %p60 = por %p58, %p59
      %s61 = ssub.s32 %s27, %s34
      %p62 = scmp.eq.s32.totalorder %s61, 0
      %s64 = sadd.s32 %s63, 1
      %s65 = scalar_select %p62, %s63, %s64
      %p68 = pneg %p62
      %p69 = scmp.eq.s32.totalorder %s27, 1
      %p70 = por %p68, %p69
      %p71 = scmp.ne.s32.totalorder %s63, %s66
      %p72 = scmp.eq.s32.totalorder %s27, 0
      %p73 = por %p71, %p72
      %p74 = scmp.ne.s32.totalorder %s63, %s66
      %p75 = scmp.eq.s32.totalorder %s32, 1
      %p76 = por %p74, %p75
      %p77 = scmp.ne.s32.totalorder %s66, %s67
      %p78 = scmp.eq.s32.totalorder %s32, 0
      %p79 = por %p77, %p78
      %p80 = scmp.ne.s32.totalorder %s66, %s67
      %p81 = scmp.eq.s32.totalorder %s33, 1
      %p82 = por %p80, %p81
      %p84 = scmp.ne.s32.totalorder %s67, %s83
      %p85 = scmp.eq.s32.totalorder %s33, 0
      %p86 = por %p84, %p85
      %s88 = sadd.s32 %s87, 1
      %p91 = scmp.eq.s32.totalorder %s27, 1
      %p92 = scmp.ne.s32.totalorder %s87, %s89
      %p93 = scmp.eq.s32.totalorder %s27, 0
      %p94 = por %p92, %p93
      %p95 = scmp.ne.s32.totalorder %s87, %s89
      %p96 = scmp.eq.s32.totalorder %s32, 1
      %p97 = por %p95, %p96
      %p98 = scmp.ne.s32.totalorder %s89, %s90
      %p99 = scmp.eq.s32.totalorder %s32, 0
      %p100 = por %p98, %p99
      %p101 = scmp.ne.s32.totalorder %s89, %s90
      %p102 = scmp.eq.s32.totalorder %s33, 1
      %p103 = por %p101, %p102
      %p105 = scmp.ne.s32.totalorder %s90, %s104
      %p106 = scmp.eq.s32.totalorder %s33, 0
      %p107 = por %p105, %p106
      %s109 = sadd.s32 %s108, 1
      %p112 = scmp.eq.s32.totalorder %s27, 1
      %p113 = scmp.ne.s32.totalorder %s108, %s110
      %p114 = scmp.eq.s32.totalorder %s27, 0
      %p115 = por %p113, %p114
      %p116 = scmp.ne.s32.totalorder %s108, %s110
      %p117 = scmp.eq.s32.totalorder %s32, 1
      %p118 = por %p116, %p117
      %p119 = scmp.ne.s32.totalorder %s110, %s111
      %p120 = scmp.eq.s32.totalorder %s32, 0
      %p121 = por %p119, %p120
      %p122 = scmp.ne.s32.totalorder %s110, %s111
      %p123 = scmp.eq.s32.totalorder %s33, 1
      %p124 = por %p122, %p123
      %p126 = scmp.ne.s32.totalorder %s111, %s125
      %p127 = scmp.eq.s32.totalorder %s33, 0
      %p128 = por %p126, %p127
      %s130 = sadd.s32 %s129, 1
      %p133 = scmp.eq.s32.totalorder %s27, 1
      %p134 = scmp.ne.s32.totalorder %s129, %s131
      %p135 = scmp.eq.s32.totalorder %s27, 0
      %p136 = por %p134, %p135
      %p137 = scmp.ne.s32.totalorder %s129, %s131
      %p138 = scmp.eq.s32.totalorder %s32, 1
      %p139 = por %p137, %p138
      %p140 = scmp.ne.s32.totalorder %s131, %s132
      %p141 = scmp.eq.s32.totalorder %s32, 0
      %p142 = por %p140, %p141
      %p143 = scmp.ne.s32.totalorder %s131, %s132
      %p144 = scmp.eq.s32.totalorder %s33, 1
      %p145 = por %p143, %p144
      %p147 = scmp.ne.s32.totalorder %s132, %s146
      %p148 = scmp.eq.s32.totalorder %s33, 0
      %p149 = por %p147, %p148
      %s151 = sadd.s32 %s150, 1
      %p154 = scmp.eq.s32.totalorder %s27, 1
      %p155 = scmp.ne.s32.totalorder %s150, %s152
      %p156 = scmp.eq.s32.totalorder %s27, 0
      %p157 = por %p155, %p156
      %p158 = scmp.ne.s32.totalorder %s150, %s152
      %p159 = scmp.eq.s32.totalorder %s32, 1
      %p160 = por %p158, %p159
      %p161 = scmp.ne.s32.totalorder %s152, %s153
      %p162 = scmp.eq.s32.totalorder %s32, 0
      %p163 = por %p161, %p162
      %p164 = scmp.ne.s32.totalorder %s152, %s153
      %p165 = scmp.eq.s32.totalorder %s33, 1
      %p166 = por %p164, %p165
      %p168 = scmp.ne.s32.totalorder %s153, %s167
      %p169 = scmp.eq.s32.totalorder %s33, 0
      %p170 = por %p168, %p169
      %s171 = ssub.s32 %s27, %s34
      %p172 = scmp.eq.s32.totalorder %s171, 0
      %s174 = sadd.s32 %s173, 1
      %s175 = scalar_select %p172, %s173, %s174
      %p178 = pneg %p172
      %p179 = scmp.eq.s32.totalorder %s27, 1
      %p180 = por %p178, %p179
      %p181 = scmp.ne.s32.totalorder %s173, %s176
      %p182 = scmp.eq.s32.totalorder %s27, 0
      %p183 = por %p181, %p182
      %p184 = scmp.ne.s32.totalorder %s173, %s176
      %p185 = scmp.eq.s32.totalorder %s32, 1
      %p186 = por %p184, %p185
      %p187 = scmp.ne.s32.totalorder %s176, %s177
      %p188 = scmp.eq.s32.totalorder %s32, 0
      %p189 = por %p187, %p188
      %p190 = scmp.ne.s32.totalorder %s176, %s177
      %p191 = scmp.eq.s32.totalorder %s33, 1
      %p192 = por %p190, %p191
      %p194 = scmp.ne.s32.totalorder %s177, %s193
      %p195 = scmp.eq.s32.totalorder %s33, 0
      %p196 = por %p194, %p195
      %s197 = ssub.s32 %s27, %s34
      %p198 = scmp.eq.s32.totalorder %s197, 0
      %s200 = sadd.s32 %s199, 1
      %s201 = scalar_select %p198, %s199, %s200
      %p204 = pneg %p198
      %p205 = scmp.eq.s32.totalorder %s27, 1
      %p206 = por %p204, %p205
      %p207 = scmp.ne.s32.totalorder %s199, %s202
      %p208 = scmp.eq.s32.totalorder %s27, 0
      %p209 = por %p207, %p208
      %p210 = scmp.ne.s32.totalorder %s199, %s202
      %p211 = scmp.eq.s32.totalorder %s32, 1
      %p212 = por %p210, %p211
      %p213 = scmp.ne.s32.totalorder %s202, %s203
      %p214 = scmp.eq.s32.totalorder %s32, 0
      %p215 = por %p213, %p214
      %p216 = scmp.ne.s32.totalorder %s202, %s203
      %p217 = scmp.eq.s32.totalorder %s33, 1
      %p218 = por %p216, %p217
      %p220 = scmp.ne.s32.totalorder %s203, %s219
      %p221 = scmp.eq.s32.totalorder %s33, 0
      %p222 = por %p220, %p221
      %p223 = scmp.le.s32.totalorder 1, %s27
      %p224 = scmp.lt.s32.totalorder %s27, 3
      %p225 = pnand %p223, %p224
      %p226 = pneg %p225
      // Predicated region
      $region9: #{tpu_custom_call.1} parent=5 // pred_check
        _
      $region10: #{tpu_custom_call.1} parent=5 // pred_check_branch
        %228 = sbr.rel (%p225) target = $region12
      $region11: #{tpu_custom_call.1} parent=5 // pred_region
        %s229 = ssub.s32 %s27, 1
        // Predicated region
        $region13: #{tpu_custom_call.1} parent=11 // pred_check
          %p230 = pneg %p100
        $region14: #{tpu_custom_call.1} parent=11 // pred_check_branch
          %232 = sbr.rel (%p230) target = $region16
        $region15: #{tpu_custom_call.1} parent=11 // pred_region
          %s234 = ssub.s32 12288, 12288
          %235 = vsyncadd [#allocation6], %s234
          %s236 = sshll.u32 [#allocation7], 4
          %s237 = int_to_ptr.vmem [resolvable:$true] %s236
          %242 = dma.hbm_to_vmem [thread:$0]  %s2, 12288, %s237, [#allocation6], 768, 768, 48
        $region16: #{tpu_custom_call.1} parent=11 // pred_fallthru
          _
        // Predicated region
        $region17: #{tpu_custom_call.1} parent=11 // pred_check
          %p243 = pneg %p121
        $region18: #{tpu_custom_call.1} parent=11 // pred_check_branch
          %245 = sbr.rel (%p243) target = $region20
        $region19: #{tpu_custom_call.1} parent=11 // pred_region
          %s247 = ssub.s32 256, 256
          %248 = vsyncadd [#allocation9], %s247
          %s249 = sshll.u32 [#allocation8], 4
          %s250 = int_to_ptr.vmem [resolvable:$true] %s249
          %255 = dma.hbm_to_vmem [thread:$0]  %s3, 256, %s250, [#allocation9], 128, 128, 8
        $region20: #{tpu_custom_call.1} parent=11 // pred_fallthru
          _
        // Predicated region
        $region21: #{tpu_custom_call.1} parent=11 // pred_check
          %p256 = pneg %p142
        $region22: #{tpu_custom_call.1} parent=11 // pred_check_branch
          %258 = sbr.rel (%p256) target = $region24
        $region23: #{tpu_custom_call.1} parent=11 // pred_region
          _
        $region24: #{tpu_custom_call.1} parent=11 // pred_fallthru
          _
        // Predicated region
        $region25: #{tpu_custom_call.1} parent=11 // pred_check
          %p259 = pneg %p163
        $region26: #{tpu_custom_call.1} parent=11 // pred_check_branch
          %261 = sbr.rel (%p259) target = $region28
        $region27: #{tpu_custom_call.1} parent=11 // pred_region
          _
        $region28: #{tpu_custom_call.1} parent=11 // pred_fallthru
          _
      $region12: #{tpu_custom_call.1} parent=5 // pred_fallthru
        _
      %p262 = scmp.lt.s32.totalorder %s27, 2
      // Predicated region
      $region29: #{tpu_custom_call.1} parent=5 // pred_check
        %p263 = pneg %p262
      $region30: #{tpu_custom_call.1} parent=5 // pred_check_branch
        %265 = sbr.rel (%p263) target = $region32
      $region31: #{tpu_custom_call.1} parent=5 // pred_region
        // Predicated region
        $region33: #{tpu_custom_call.1} parent=31 // pred_check
          %p266 = pneg %p47
        $region34: #{tpu_custom_call.1} parent=31 // pred_check_branch
          %268 = sbr.rel (%p266) target = $region36
        $region35: #{tpu_custom_call.1} parent=31 // pred_region
          %s269 = sand.u32 %s37, 1
          %s270 = scalar_lea.sflag [#allocation3], %s269
          %s271 = sand.u32 %s37, 1
          %s272 = smul.addr %s271, 8
          %s273 = scalar_lea.vmem [#allocation2], %s272
          %s275 = ssub.s32 128, 128
          %276 = vsyncadd %s270, %s275
          %s277 = smul.addr %s27, 128
          %s278 = scalar_lea.hbm %s0, %s277
          %s280 = sshll.u32 %s273, 4
          %s281 = int_to_ptr.vmem [resolvable:$true] %s280
          %283 = dma.hbm_to_vmem [thread:$0]  %s278, 128, %s281, %s270
        $region36: #{tpu_custom_call.1} parent=31 // pred_fallthru
          _
        // Predicated region
        $region37: #{tpu_custom_call.1} parent=31 // pred_check
          %p284 = pneg %p73
        $region38: #{tpu_custom_call.1} parent=31 // pred_check_branch
          %286 = sbr.rel (%p284) target = $region40
        $region39: #{tpu_custom_call.1} parent=31 // pred_region
          %s287 = sand.u32 %s27, 1
          %s288 = scalar_lea.sflag [#allocation6], %s287
          %s289 = sand.u32 %s63, 1
          %s290 = smul.addr %s289, 16
          %s291 = scalar_lea.vmem [#allocation5], %s290
          %s293 = ssub.s32 256, 256
          %294 = vsyncadd %s288, %s293
          %s295 = smul.addr %s27, 2
          %s296 = smul.addr %s295, 128
          %s297 = scalar_lea.hbm %s1, %s296
          %s298 = sshll.u32 %s291, 4
          %s299 = int_to_ptr.vmem [resolvable:$true] %s298
          %304 = dma.hbm_to_vmem [thread:$0]  %s297, 256, %s299, %s288, 128, 128, 8
        $region40: #{tpu_custom_call.1} parent=31 // pred_fallthru
          _
      $region32: #{tpu_custom_call.1} parent=5 // pred_fallthru
        _
      %p305 = scmp.le.s32.totalorder 1, %s27
      %p306 = scmp.lt.s32.totalorder %s27, 3
      %p307 = pnand %p305, %p306
      %p308 = pneg %p307
      // Predicated region
      $region41: #{tpu_custom_call.1} parent=5 // pred_check
        _
      $region42: #{tpu_custom_call.1} parent=5 // pred_check_branch
        %310 = sbr.rel (%p307) target = $region44
      $region43: #{tpu_custom_call.1} parent=5 // pred_region
        %s311 = ssub.s32 %s27, 1
        %s312 = sand.u32 %s40, 1
        %s313 = scalar_lea.sflag [#allocation3], %s312
        %s314 = sand.u32 %s40, 1
        %s315 = smul.addr %s314, 8
        %s316 = scalar_lea.vmem [#allocation2], %s315
        // Predicated region
        $region45: #{tpu_custom_call.1} parent=43 // pred_check
          %p317 = pneg %p53
        $region46: #{tpu_custom_call.1} parent=43 // pred_check_branch
          %319 = sbr.rel (%p317) target = $region48
        $region47: #{tpu_custom_call.1} parent=43 // pred_region
          %320 = dma.done %s313, 128
        $region48: #{tpu_custom_call.1} parent=43 // pred_fallthru
          _
        %s321 = sand.u32 %s32, 1
        %s322 = scalar_lea.sflag [#allocation6], %s321
        %s323 = sand.u32 %s66, 1
        %s324 = smul.addr %s323, 16
        %s325 = scalar_lea.vmem [#allocation5], %s324
        // Predicated region
        $region49: #{tpu_custom_call.1} parent=43 // pred_check
          %p326 = pneg %p79
        $region50: #{tpu_custom_call.1} parent=43 // pred_check_branch
          %328 = sbr.rel (%p326) target = $region52
        $region51: #{tpu_custom_call.1} parent=43 // pred_region
          %329 = dma.done %s322, 256
        $region52: #{tpu_custom_call.1} parent=43 // pred_fallthru
          _
        // Predicated region
        $region53: #{tpu_custom_call.1} parent=43 // pred_check
          %p330 = pneg %p100
        $region54: #{tpu_custom_call.1} parent=43 // pred_check_branch
          %332 = sbr.rel (%p330) target = $region56
        $region55: #{tpu_custom_call.1} parent=43 // pred_region
          %333 = dma.done [#allocation6], 12288
        $region56: #{tpu_custom_call.1} parent=43 // pred_fallthru
          _
        // Predicated region
        $region57: #{tpu_custom_call.1} parent=43 // pred_check
          %p334 = pneg %p121
        $region58: #{tpu_custom_call.1} parent=43 // pred_check_branch
          %336 = sbr.rel (%p334) target = $region60
        $region59: #{tpu_custom_call.1} parent=43 // pred_region
          %337 = dma.done [#allocation9], 256
        $region60: #{tpu_custom_call.1} parent=43 // pred_fallthru
          _
        %s338 = sand.u32 %s40, 1
        %s339 = scalar_lea.sflag [#allocation3], %s338
        %s340 = sand.u32 %s40, 1
        %s341 = smul.addr %s340, 8
        %s342 = scalar_lea.vmem [#allocation2], %s341
        %p343 = pneg %p53
        %p344 = pneg %p50
        %s345 = sand.u32 %s32, 1
        %s346 = scalar_lea.sflag [#allocation6], %s345
        %s347 = sand.u32 %s66, 1
        %s348 = smul.addr %s347, 16
        %s349 = scalar_lea.vmem [#allocation5], %s348
        %p350 = pneg %p79
        %p351 = pneg %p76
        %p352 = pneg %p100
        %p353 = pneg %p97
        %p354 = pneg %p121
        %p355 = pneg %p118
        %p356 = pneg %p142
        %p357 = pneg %p139
        %p358 = pneg %p163
        %p359 = pneg %p160
        %p360 = pneg %p189
        %p361 = pneg %p186
        %s362 = sand.u32 %s176, 1
        %s363 = scalar_lea.sflag [#allocation4], %s362
        %s364 = sand.u32 %s176, 1
        %s365 = smul.addr %s364, 8
        %s366 = scalar_lea.vmem [#allocation10], %s365
        %p367 = pneg %p215
        %p368 = pneg %p212
        %s369 = sand.u32 %s202, 1
        %s370 = scalar_lea.sflag [#allocation12], %s369
        %s371 = sand.u32 %s202, 1
        %s372 = smul.addr %s371, 16
        %s373 = scalar_lea.vmem [#allocation11], %s372
        %v375 = vld [vmem:[%s316] sm:$0xff]
        %v376 = vld [vmem:[%s325] sm:$0xff]
        %v377 = vld [vmem:[%s325 + $0x8] sm:$0xff]
        %v378 = vld [vmem:[#allocation8] sm:$0x1]
        %v379 = vld [vmem:[#allocation8 + $0x1] sm:$0x1]
        %380 = vadd.xlane.f32.xlu0 %v376
        %v381 = vpop.xlane.xlu0 %380
        %382 = vadd.xlane.f32.xlu0 %v377
        %v383 = vpop.xlane.xlu0 %382
        %v384 = vmul.f32 %v381, 0.03125
        %v385 = vmul.f32 %v383, 0.03125
        %v386 = vmul.f32 %v376, %v376
        %v387 = vmul.f32 %v377, %v377
        %388 = vadd.xlane.f32.xlu0 %v386
        %v389 = vpop.xlane.xlu0 %388
        %390 = vadd.xlane.f32.xlu0 %v387
        %v391 = vpop.xlane.xlu0 %390
        %v392 = vmul.f32 %v389, 0.03125
        %v393 = vmul.f32 %v391, 0.03125
        %v394 = vmul.f32 %v384, %v384
        %v395 = vmul.f32 %v385, %v385
        %v396 = vsub.f32 %v392, %v394
        %v397 = vsub.f32 %v393, %v395
        %v398 = vsub.f32 %v376, %v384
        %v399 = vsub.f32 %v377, %v385
        %v400 = vadd.f32 %v396, 1e-05
        %v401 = vadd.f32 %v397, 1e-05
        %v402 = vrsqrt.pop %v400
        %v403 = vrsqrt.pop %v401
        %v404 = vmul.f32 %v398, %v402
        %v405 = vmul.f32 %v399, %v403
        %v406 = vlaneseq
        %v407 = vshrl.u32 %v406, 7
        %v408 = vsub.s32 0, %v407
        %v409 = vrot.slane %v378, %v408
        %v410 = vmul.f32 %v404, %v409
        %v411 = vmul.f32 %v405, %v409
        %v412 = vlaneseq
        %v413 = vshrl.u32 %v412, 7
        %v414 = vsub.s32 0, %v413
        %v415 = vrot.slane %v379, %v414
        %v416 = vadd.f32 %v410, %v415
        %v417 = vadd.f32 %v411, %v415
        %v418 = vld [vmem:[#allocation8 + $0x2] sm:$0x1]
        %v419 = vld [vmem:[#allocation8 + $0x3] sm:$0x1]
        %420 = vadd.xlane.f32.xlu0 %v375
        %v421 = vpop.xlane.xlu0 %420
        %v422 = vmul.f32 %v421, 0.03125
        %v423 = vmul.f32 %v375, %v375
        %424 = vadd.xlane.f32.xlu0 %v423
        %v425 = vpop.xlane.xlu0 %424
        %v426 = vmul.f32 %v425, 0.03125
        %v427 = vmul.f32 %v422, %v422
        %v428 = vsub.f32 %v426, %v427
        %v429 = vsub.f32 %v375, %v422
        %v430 = vadd.f32 %v428, 1e-05
        %v431 = vrsqrt.pop %v430
        %v432 = vmul.f32 %v429, %v431
        %v433 = vlaneseq
        %v434 = vshrl.u32 %v433, 7
        %v435 = vsub.s32 0, %v434
        %v436 = vrot.slane %v418, %v435
        %v437 = vmul.f32 %v432, %v436
        %v438 = vlaneseq
        %v439 = vshrl.u32 %v438, 7
        %v440 = vsub.s32 0, %v439
        %v441 = vrot.slane %v419, %v440
        %v442 = vadd.f32 %v437, %v441
        %v443 = vpack.c.bf16 %v417, %v416
        %v444 = vld [vmem:[#allocation7 + $0x4] sm:$0xff]
        %v445 = vld [vmem:[#allocation7 + $0xc] sm:$0xf]
        %v446 = vld [vmem:[#allocation7 + $0x34] sm:$0xff]
        %v447 = vld [vmem:[#allocation7 + $0x3c] sm:$0xf]
        %v448 = vld [vmem:[#allocation7 + $0x64] sm:$0xff]
        %v449 = vld [vmem:[#allocation7 + $0x6c] sm:$0xf]
        %v450 = vld [vmem:[#allocation7 + $0x94] sm:$0xff]
        %v451 = vld [vmem:[#allocation7 + $0x9c] sm:$0xf]
        %v452 = vld [vmem:[#allocation7 + $0xc4] sm:$0xff]
        %v453 = vld [vmem:[#allocation7 + $0xcc] sm:$0xf]
        %v454 = vld [vmem:[#allocation7 + $0xf4] sm:$0xff]
        %v455 = vld [vmem:[#allocation7 + $0xfc] sm:$0xf]
        %v456 = vld [vmem:[#allocation7 + $0x124] sm:$0xff]
        %v457 = vld [vmem:[#allocation7 + $0x12c] sm:$0xf]
        %v458 = vld [vmem:[#allocation7 + $0x154] sm:$0xff]
        %v459 = vld [vmem:[#allocation7 + $0x15c] sm:$0xf]
        %v460 = vld [vmem:[#allocation7 + $0x184] sm:$0xff]
        %v461 = vld [vmem:[#allocation7 + $0x18c] sm:$0xf]
        %v462 = vld [vmem:[#allocation7 + $0x1b4] sm:$0xff]
        %v463 = vld [vmem:[#allocation7 + $0x1bc] sm:$0xf]
        %v464 = vld [vmem:[#allocation7 + $0x1e4] sm:$0xff]
        %v465 = vld [vmem:[#allocation7 + $0x1ec] sm:$0xf]
        %v466 = vld [vmem:[#allocation7 + $0x214] sm:$0xff]
        %v467 = vld [vmem:[#allocation7 + $0x21c] sm:$0xf]
        %v468 = vld [vmem:[#allocation7 + $0x244] sm:$0xff]
        %v469 = vld [vmem:[#allocation7 + $0x24c] sm:$0xf]
        %v470 = vld [vmem:[#allocation7 + $0x274] sm:$0xff]
        %v471 = vld [vmem:[#allocation7 + $0x27c] sm:$0xf]
        %v472 = vld [vmem:[#allocation7 + $0x2a4] sm:$0xff]
        %v473 = vld [vmem:[#allocation7 + $0x2ac] sm:$0xf]
        %v474 = vld [vmem:[#allocation7 + $0x2d4] sm:$0xff]
        %v475 = vld [vmem:[#allocation7 + $0x2dc] sm:$0xf]
        %v508 = vunpack.c.l.b16 %v444
        %v509 = vunpack.c.h.b16 %v444
        %v510 = vunpack.c.l.b16 %v445
        %v511 = vunpack.c.l.b16 %v446
        %v512 = vunpack.c.h.b16 %v446
        %v513 = vunpack.c.l.b16 %v447
        %v514 = vunpack.c.l.b16 %v448
        %v515 = vunpack.c.h.b16 %v448
        %v516 = vunpack.c.l.b16 %v449
        %v517 = vunpack.c.l.b16 %v450
        %v518 = vunpack.c.h.b16 %v450
        %v519 = vunpack.c.l.b16 %v451
        %v520 = vunpack.c.l.b16 %v452
        %v521 = vunpack.c.h.b16 %v452
        %v522 = vunpack.c.l.b16 %v453
        %v523 = vunpack.c.l.b16 %v454
        %v524 = vunpack.c.h.b16 %v454
        %v525 = vunpack.c.l.b16 %v455
        %v526 = vunpack.c.l.b16 %v456
        %v527 = vunpack.c.h.b16 %v456
        %v528 = vunpack.c.l.b16 %v457
        %v529 = vunpack.c.l.b16 %v458
        %v530 = vunpack.c.h.b16 %v458
        %v531 = vunpack.c.l.b16 %v459
        %v532 = vunpack.c.l.b16 %v460
        %v533 = vunpack.c.h.b16 %v460
        %v534 = vunpack.c.l.b16 %v461
        %v535 = vunpack.c.l.b16 %v462
        %v536 = vunpack.c.h.b16 %v462
        %v537 = vunpack.c.l.b16 %v463
        %v538 = vunpack.c.l.b16 %v464
        %v539 = vunpack.c.h.b16 %v464
        %v540 = vunpack.c.l.b16 %v465
        %v541 = vunpack.c.l.b16 %v466
        %v542 = vunpack.c.h.b16 %v466
        %v543 = vunpack.c.l.b16 %v467
        %v544 = vunpack.c.l.b16 %v468
        %v545 = vunpack.c.h.b16 %v468
        %v546 = vunpack.c.l.b16 %v469
        %v547 = vunpack.c.l.b16 %v470
        %v548 = vunpack.c.h.b16 %v470
        %v549 = vunpack.c.l.b16 %v471
        %v550 = vunpack.c.l.b16 %v472
        %v551 = vunpack.c.h.b16 %v472
        %v552 = vunpack.c.l.b16 %v473
        %v553 = vunpack.c.l.b16 %v474
        %v554 = vunpack.c.h.b16 %v474
        %v555 = vunpack.c.l.b16 %v475
        %v556 = vpack.c.b16 %v511, %v508
        %v557 = vpack.c.b16 %v512, %v509
        %v558 = vpack.c.b16 %v513, %v510
        %v559 = vpack.c.b16 %v517, %v514
        %v560 = vpack.c.b16 %v518, %v515
        %v561 = vpack.c.b16 %v519, %v516
        %v562 = vpack.c.b16 %v523, %v520
        %v563 = vpack.c.b16 %v524, %v521
        %v564 = vpack.c.b16 %v525, %v522
        %v565 = vpack.c.b16 %v529, %v526
        %v566 = vpack.c.b16 %v530, %v527
        %v567 = vpack.c.b16 %v531, %v528
        %v568 = vpack.c.b16 %v535, %v532
        %v569 = vpack.c.b16 %v536, %v533
        %v570 = vpack.c.b16 %v537, %v534
        %v571 = vpack.c.b16 %v541, %v538
        %v572 = vpack.c.b16 %v542, %v539
        %v573 = vpack.c.b16 %v543, %v540
        %v574 = vpack.c.b16 %v547, %v544
        %v575 = vpack.c.b16 %v548, %v545
        %v576 = vpack.c.b16 %v549, %v546
        %v577 = vpack.c.b16 %v553, %v550
        %v578 = vpack.c.b16 %v554, %v551
        %v579 = vpack.c.b16 %v555, %v552
        %604 = vmatprep.subr.bf16.mxu0 %v557
        %605 = vmatpush1.bf16.msra.mxu0 %v556
        %606 = vmatprep.subr.bf16.mxu0 %v560
        %607 = vmatpush1.bf16.msra.mxu0 %v559
        %608 = vmatprep.subr.bf16.mxu0 %v563
        %609 = vmatpush1.bf16.msra.mxu0 %v562
        %610 = vmatprep.subr.bf16.mxu0 %v566
        %611 = vmatpush1.bf16.msra.mxu0 %v565
        %612 = vmatprep.subr.bf16.mxu0 %v569
        %613 = vmatpush1.bf16.msra.mxu0 %v568
        %614 = vmatprep.subr.bf16.mxu0 %v572
        %615 = vmatpush1.bf16.msra.mxu0 %v571
        %616 = vmatprep.subr.bf16.mxu0 %v575
        %617 = vmatpush1.bf16.msra.mxu0 %v574
        %618 = vmatprep.subr.bf16.mxu0 %v578
        %619 = vmatpush1.bf16.msra.mxu0 %v577
        %620 = vmatprep.subr.bf16.mxu0 0
        %621 = vmatpush1.bf16.msra.mxu0 0
        %622 = vmatprep.subr.bf16.mxu0 0
        %623 = vmatpush1.bf16.msra.mxu0 0
        %624 = vmatprep.subr.bf16.mxu0 0
        %625 = vmatpush1.bf16.msra.mxu0 0
        %626 = vmatprep.subr.bf16.mxu0 0
        %627 = vmatpush1.bf16.msra.mxu0 0
        %628 = vmatprep.subr.bf16.mxu0 0
        %629 = vmatpush1.bf16.msra.mxu0 0
        %630 = vmatprep.subr.bf16.mxu0 0
        %631 = vmatpush1.bf16.msra.mxu0 0
        %632 = vmatprep.subr.bf16.mxu0 0
        %633 = vmatpush1.bf16.msra.mxu0 0
        %634 = vmatprep.subr.bf16.mxu0 0
        %635 = vmatpush1.bf16.msra.mxu0 0
        %636 = vmatprep.mubr.bf16.mxu0 0
        %637 = vmatmul.mubr.bf16.gmra.mrb[0].mxu0 %v443
        %v638 = vpop.f32.mrb[0].mxu0
        %v639 = vadd.f32 0.0, %v638
        %v640 = vpop.f32.mrb[0].mxu0
        %v641 = vadd.f32 0.0, %v640
        %v642 = vpop.f32.mrb[0].mxu0
        %v643 = vadd.f32 0.0, %v642
        %v644 = vpop.f32.mrb[0].mxu0
        %v645 = vadd.f32 0.0, %v644
        %646 = vdwg.mxu0
        %647 = vmatprep.subr.bf16.mxu0 0
        %648 = vmatpush1.bf16.msra.mxu0 %v558
        %649 = vmatprep.subr.bf16.mxu0 0
        %650 = vmatpush1.bf16.msra.mxu0 %v561
        %651 = vmatprep.subr.bf16.mxu0 0
        %652 = vmatpush1.bf16.msra.mxu0 %v564
        %653 = vmatprep.subr.bf16.mxu0 0
        %654 = vmatpush1.bf16.msra.mxu0 %v567
        %655 = vmatprep.subr.bf16.mxu0 0
        %656 = vmatpush1.bf16.msra.mxu0 %v570
        %657 = vmatprep.subr.bf16.mxu0 0
        %658 = vmatpush1.bf16.msra.mxu0 %v573
        %659 = vmatprep.subr.bf16.mxu0 0
        %660 = vmatpush1.bf16.msra.mxu0 %v576
        %661 = vmatprep.subr.bf16.mxu0 0
        %662 = vmatpush1.bf16.msra.mxu0 %v579
        %663 = vmatprep.subr.bf16.mxu0 0
        %664 = vmatpush1.bf16.msra.mxu0 0
        %665 = vmatprep.subr.bf16.mxu0 0
        %666 = vmatpush1.bf16.msra.mxu0 0
        %667 = vmatprep.subr.bf16.mxu0 0
        %668 = vmatpush1.bf16.msra.mxu0 0
        %669 = vmatprep.subr.bf16.mxu0 0
        %670 = vmatpush1.bf16.msra.mxu0 0
        %671 = vmatprep.subr.bf16.mxu0 0
        %672 = vmatpush1.bf16.msra.mxu0 0
        %673 = vmatprep.subr.bf16.mxu0 0
        %674 = vmatpush1.bf16.msra.mxu0 0
        %675 = vmatprep.subr.bf16.mxu0 0
        %676 = vmatpush1.bf16.msra.mxu0 0
        %677 = vmatprep.subr.bf16.mxu0 0
        %678 = vmatpush1.bf16.msra.mxu0 0
        %679 = vmatprep.mubr.bf16.mxu0 0
        %680 = vmatmul.mubr.bf16.gmra.mrb[0].mxu0 %v443
        %v681 = vpop.f32.mrb[0].mxu0
        %v682 = vadd.f32 0.0, %v681
        %v683 = vpop.f32.mrb[0].mxu0
        %v684 = vpop.f32.mrb[0].mxu0
        %v685 = vadd.f32 0.0, %v684
        %v686 = vpop.f32.mrb[0].mxu0
        %687 = vdwg.mxu0
        %v688 = vpack.c.bf16 %v442, %v442
        %v689 = vld [vmem:[#allocation7] sm:$0xf]
        %v690 = vld [vmem:[#allocation7 + $0x30] sm:$0xf]
        %v691 = vld [vmem:[#allocation7 + $0x60] sm:$0xf]
        %v692 = vld [vmem:[#allocation7 + $0x90] sm:$0xf]
        %v693 = vld [vmem:[#allocation7 + $0xc0] sm:$0xf]
        %v694 = vld [vmem:[#allocation7 + $0xf0] sm:$0xf]
        %v695 = vld [vmem:[#allocation7 + $0x120] sm:$0xf]
        %v696 = vld [vmem:[#allocation7 + $0x150] sm:$0xf]
        %v697 = vld [vmem:[#allocation7 + $0x180] sm:$0xf]
        %v698 = vld [vmem:[#allocation7 + $0x1b0] sm:$0xf]
        %v699 = vld [vmem:[#allocation7 + $0x1e0] sm:$0xf]
        %v700 = vld [vmem:[#allocation7 + $0x210] sm:$0xf]
        %v701 = vld [vmem:[#allocation7 + $0x240] sm:$0xf]
        %v702 = vld [vmem:[#allocation7 + $0x270] sm:$0xf]
        %v703 = vld [vmem:[#allocation7 + $0x2a0] sm:$0xf]
        %v704 = vld [vmem:[#allocation7 + $0x2d0] sm:$0xf]
        %v721 = vunpack.c.l.b16 %v689
        %v722 = vunpack.c.l.b16 %v690
        %v723 = vunpack.c.l.b16 %v691
        %v724 = vunpack.c.l.b16 %v692
        %v725 = vunpack.c.l.b16 %v693
        %v726 = vunpack.c.l.b16 %v694
        %v727 = vunpack.c.l.b16 %v695
        %v728 = vunpack.c.l.b16 %v696
        %v729 = vunpack.c.l.b16 %v697
        %v730 = vunpack.c.l.b16 %v698
        %v731 = vunpack.c.l.b16 %v699
        %v732 = vunpack.c.l.b16 %v700
        %v733 = vunpack.c.l.b16 %v701
        %v734 = vunpack.c.l.b16 %v702
        %v735 = vunpack.c.l.b16 %v703
        %v736 = vunpack.c.l.b16 %v704
        %v737 = vpack.c.b16 %v722, %v721
        %v738 = vpack.c.b16 %v724, %v723
        %v739 = vpack.c.b16 %v726, %v725
        %v740 = vpack.c.b16 %v728, %v727
        %v741 = vpack.c.b16 %v730, %v729
        %v742 = vpack.c.b16 %v732, %v731
        %v743 = vpack.c.b16 %v734, %v733
        %v744 = vpack.c.b16 %v736, %v735
        %753 = vmatprep.subr.bf16.mxu0 0
        %754 = vmatpush1.bf16.msra.mxu0 %v737
        %755 = vmatprep.subr.bf16.mxu0 0
        %756 = vmatpush1.bf16.msra.mxu0 %v738
        %757 = vmatprep.subr.bf16.mxu0 0
        %758 = vmatpush1.bf16.msra.mxu0 %v739
        %759 = vmatprep.subr.bf16.mxu0 0
        %760 = vmatpush1.bf16.msra.mxu0 %v740
        %761 = vmatprep.subr.bf16.mxu0 0
        %762 = vmatpush1.bf16.msra.mxu0 %v741
        %763 = vmatprep.subr.bf16.mxu0 0
        %764 = vmatpush1.bf16.msra.mxu0 %v742
        %765 = vmatprep.subr.bf16.mxu0 0
        %766 = vmatpush1.bf16.msra.mxu0 %v743
        %767 = vmatprep.subr.bf16.mxu0 0
        %768 = vmatpush1.bf16.msra.mxu0 %v744
        %769 = vmatprep.subr.bf16.mxu0 0
        %770 = vmatpush1.bf16.msra.mxu0 0
        %771 = vmatprep.subr.bf16.mxu0 0
        %772 = vmatpush1.bf16.msra.mxu0 0
        %773 = vmatprep.subr.bf16.mxu0 0
        %774 = vmatpush1.bf16.msra.mxu0 0
        %775 = vmatprep.subr.bf16.mxu0 0
        %776 = vmatpush1.bf16.msra.mxu0 0
        %777 = vmatprep.subr.bf16.mxu0 0
        %778 = vmatpush1.bf16.msra.mxu0 0
        %779 = vmatprep.subr.bf16.mxu0 0
        %780 = vmatpush1.bf16.msra.mxu0 0
        %781 = vmatprep.subr.bf16.mxu0 0
        %782 = vmatpush1.bf16.msra.mxu0 0
        %783 = vmatprep.subr.bf16.mxu0 0
        %784 = vmatpush1.bf16.msra.mxu0 0
        %785 = vmatprep.mubr.bf16.mxu0 0
        %786 = vmatmul.mubr.bf16.gmra.mrb[0].mxu0 %v688
        %v787 = vpop.f32.mrb[0].mxu0
        %v788 = vadd.f32 0.0, %v787
        %v789 = vpop.f32.mrb[0].mxu0
        %v790 = vpop.f32.mrb[0].mxu0
        %v791 = vpop.f32.mrb[0].mxu0
        %792 = vdwg.mxu0
        %v793 = vpack.c.bf16 %v788, %v788
        %v794 = vpack.c.bf16 %v643, %v639
        %v795 = vpack.c.bf16 %v645, %v641
        %796 = vmatprep.subr.bf16.mxu0 0
        %797 = vmatpush1.bf16.xpose.msra.mxu0 %v794
        %798 = vmatprep.subr.bf16.mxu0 0
        %799 = vmatpush1.bf16.xpose.msra.mxu0 0
        %800 = vmatprep.subr.bf16.mxu0 0
        %801 = vmatpush1.bf16.xpose.msra.mxu0 0
        %802 = vmatprep.subr.bf16.mxu0 0
        %803 = vmatpush1.bf16.xpose.msra.mxu0 0
        %804 = vmatprep.subr.bf16.mxu0 0
        %805 = vmatpush1.bf16.xpose.msra.mxu0 0
        %806 = vmatprep.subr.bf16.mxu0 0
        %807 = vmatpush1.bf16.xpose.msra.mxu0 0
        %808 = vmatprep.subr.bf16.mxu0 0
        %809 = vmatpush1.bf16.xpose.msra.mxu0 0
        %810 = vmatprep.subr.bf16.mxu0 0
        %811 = vmatpush1.bf16.xpose.msra.mxu0 0
        %812 = vmatprep.subr.bf16.mxu0 0
        %813 = vmatpush1.bf16.xpose.msra.mxu0 0
        %814 = vmatprep.subr.bf16.mxu0 0
        %815 = vmatpush1.bf16.xpose.msra.mxu0 0
        %816 = vmatprep.subr.bf16.mxu0 0
        %817 = vmatpush1.bf16.xpose.msra.mxu0 0
        %818 = vmatprep.subr.bf16.mxu0 0
        %819 = vmatpush1.bf16.xpose.msra.mxu0 0
        %820 = vmatprep.subr.bf16.mxu0 0
        %821 = vmatpush1.bf16.xpose.msra.mxu0 0
        %822 = vmatprep.subr.bf16.mxu0 0
        %823 = vmatpush1.bf16.xpose.msra.mxu0 0
        %824 = vmatprep.subr.bf16.mxu0 0
        %825 = vmatpush1.bf16.xpose.msra.mxu0 0
        %826 = vmatprep.subr.bf16.mxu0 0
        %827 = vmatpush1.bf16.xpose.msra.mxu0 0
        %828 = vmatprep.mubr.bf16.mxu0 0
        %829 = vmatmul.mubr.bf16.gmra.mrb[0].mxu0 %v793
        %v830 = vpop.f32.mrb[0].mxu0
        %v831 = vadd.f32 0.0, %v830
        %v832 = vpop.f32.mrb[0].mxu0
        %v833 = vpop.f32.mrb[0].mxu0
        %v834 = vpop.f32.mrb[0].mxu0
        %835 = vdwg.mxu0
        %vm836 = vcmask 130048
        %v837 = vsel %vm836, %v831, -inf
        %838 = vmax.xlane.f32.xlu0 %v837
        %v839 = vpop.xlane.xlu0 %838
        %v840 = vsub.f32 %v831, %v839
        %v841 = vmul.f32 %v840, 1.442695
        %v842 = vpow.pop %v841
        %v843 = vsel %vm836, %v842, 0.0
        %844 = vadd.xlane.f32.xlu0 %v843
        %v845 = vpop.xlane.xlu0 %844
        %v846 = vrcp.pop %v845
        %v847 = vmul.f32 %v842, %v846
        %v848 = vpack.c.bf16 %v847, %v847
        %v850 = vsel %vm836, %v848, 0
        %852 = vmatprep.subr.bf16.mxu0 0
        %853 = vmatpush1.bf16.msra.mxu0 %v795
        %854 = vmatprep.subr.bf16.mxu0 0
        %855 = vmatpush1.bf16.msra.mxu0 0
        %856 = vmatprep.subr.bf16.mxu0 0
        %857 = vmatpush1.bf16.msra.mxu0 0
        %858 = vmatprep.subr.bf16.mxu0 0
        %859 = vmatpush1.bf16.msra.mxu0 0
        %860 = vmatprep.subr.bf16.mxu0 0
        %861 = vmatpush1.bf16.msra.mxu0 0
        %862 = vmatprep.subr.bf16.mxu0 0
        %863 = vmatpush1.bf16.msra.mxu0 0
        %864 = vmatprep.subr.bf16.mxu0 0
        %865 = vmatpush1.bf16.msra.mxu0 0
        %866 = vmatprep.subr.bf16.mxu0 0
        %867 = vmatpush1.bf16.msra.mxu0 0
        %868 = vmatprep.subr.bf16.mxu0 0
        %869 = vmatpush1.bf16.msra.mxu0 0
        %870 = vmatprep.subr.bf16.mxu0 0
        %871 = vmatpush1.bf16.msra.mxu0 0
        %872 = vmatprep.subr.bf16.mxu0 0
        %873 = vmatpush1.bf16.msra.mxu0 0
        %874 = vmatprep.subr.bf16.mxu0 0
        %875 = vmatpush1.bf16.msra.mxu0 0
        %876 = vmatprep.subr.bf16.mxu0 0
        %877 = vmatpush1.bf16.msra.mxu0 0
        %878 = vmatprep.subr.bf16.mxu0 0
        %879 = vmatpush1.bf16.msra.mxu0 0
        %880 = vmatprep.subr.bf16.mxu0 0
        %881 = vmatpush1.bf16.msra.mxu0 0
        %882 = vmatprep.subr.bf16.mxu0 0
        %883 = vmatpush1.bf16.msra.mxu0 0
        %884 = vmatprep.mubr.bf16.mxu0 0
        %885 = vmatmul.mubr.bf16.gmra.mrb[0].mxu0 %v850
        %v886 = vpop.f32.mrb[0].mxu0
        %v887 = vadd.f32 0.0, %v886
        %v888 = vpop.f32.mrb[0].mxu0
        %v889 = vpop.f32.mrb[0].mxu0
        %v890 = vpop.f32.mrb[0].mxu0
        %891 = vdwg.mxu0
        %v892 = vpack.c.bf16 %v887, %v887
        %v893 = vld [vmem:[#allocation7 + $0x10] sm:$0xf]
        %v894 = vld [vmem:[#allocation7 + $0x40] sm:$0xf]
        %v895 = vld [vmem:[#allocation7 + $0x70] sm:$0xf]
        %v896 = vld [vmem:[#allocation7 + $0xa0] sm:$0xf]
        %v897 = vld [vmem:[#allocation7 + $0xd0] sm:$0xf]
        %v898 = vld [vmem:[#allocation7 + $0x100] sm:$0xf]
        %v899 = vld [vmem:[#allocation7 + $0x130] sm:$0xf]
        %v900 = vld [vmem:[#allocation7 + $0x160] sm:$0xf]
        %v901 = vld [vmem:[#allocation7 + $0x190] sm:$0xf]
        %v902 = vld [vmem:[#allocation7 + $0x1c0] sm:$0xf]
        %v903 = vld [vmem:[#allocation7 + $0x1f0] sm:$0xf]
        %v904 = vld [vmem:[#allocation7 + $0x220] sm:$0xf]
        %v905 = vld [vmem:[#allocation7 + $0x250] sm:$0xf]
        %v906 = vld [vmem:[#allocation7 + $0x280] sm:$0xf]
        %v907 = vld [vmem:[#allocation7 + $0x2b0] sm:$0xf]
        %v908 = vld [vmem:[#allocation7 + $0x2e0] sm:$0xf]
        %v925 = vunpack.c.l.b16 %v893
        %v926 = vunpack.c.l.b16 %v894
        %v927 = vunpack.c.l.b16 %v895
        %v928 = vunpack.c.l.b16 %v896
        %v929 = vunpack.c.l.b16 %v897
        %v930 = vunpack.c.l.b16 %v898
        %v931 = vunpack.c.l.b16 %v899
        %v932 = vunpack.c.l.b16 %v900
        %v933 = vunpack.c.l.b16 %v901
        %v934 = vunpack.c.l.b16 %v902
        %v935 = vunpack.c.l.b16 %v903
        %v936 = vunpack.c.l.b16 %v904
        %v937 = vunpack.c.l.b16 %v905
        %v938 = vunpack.c.l.b16 %v906
        %v939 = vunpack.c.l.b16 %v907
        %v940 = vunpack.c.l.b16 %v908
        %v941 = vpack.c.b16 %v926, %v925
        %v942 = vpack.c.b16 %v928, %v927
        %v943 = vpack.c.b16 %v930, %v929
        %v944 = vpack.c.b16 %v932, %v931
        %v945 = vpack.c.b16 %v934, %v933
        %v946 = vpack.c.b16 %v936, %v935
        %v947 = vpack.c.b16 %v938, %v937
        %v948 = vpack.c.b16 %v940, %v939
        %957 = vmatprep.subr.bf16.mxu0 0
        %958 = vmatpush1.bf16.msra.mxu0 %v941
        %959 = vmatprep.subr.bf16.mxu0 0
        %960 = vmatpush1.bf16.msra.mxu0 %v942
        %961 = vmatprep.subr.bf16.mxu0 0
        %962 = vmatpush1.bf16.msra.mxu0 %v943
        %963 = vmatprep.subr.bf16.mxu0 0
        %964 = vmatpush1.bf16.msra.mxu0 %v944
        %965 = vmatprep.subr.bf16.mxu0 0
        %966 = vmatpush1.bf16.msra.mxu0 %v945
        %967 = vmatprep.subr.bf16.mxu0 0
        %968 = vmatpush1.bf16.msra.mxu0 %v946
        %969 = vmatprep.subr.bf16.mxu0 0
        %970 = vmatpush1.bf16.msra.mxu0 %v947
        %971 = vmatprep.subr.bf16.mxu0 0
        %972 = vmatpush1.bf16.msra.mxu0 %v948
        %973 = vmatprep.subr.bf16.mxu0 0
        %974 = vmatpush1.bf16.msra.mxu0 0
        %975 = vmatprep.subr.bf16.mxu0 0
        %976 = vmatpush1.bf16.msra.mxu0 0
        %977 = vmatprep.subr.bf16.mxu0 0
        %978 = vmatpush1.bf16.msra.mxu0 0
        %979 = vmatprep.subr.bf16.mxu0 0
        %980 = vmatpush1.bf16.msra.mxu0 0
        %981 = vmatprep.subr.bf16.mxu0 0
        %982 = vmatpush1.bf16.msra.mxu0 0
        %983 = vmatprep.subr.bf16.mxu0 0
        %984 = vmatpush1.bf16.msra.mxu0 0
        %985 = vmatprep.subr.bf16.mxu0 0
        %986 = vmatpush1.bf16.msra.mxu0 0
        %987 = vmatprep.subr.bf16.mxu0 0
        %988 = vmatpush1.bf16.msra.mxu0 0
        %989 = vmatprep.mubr.bf16.mxu0 0
        %990 = vmatmul.mubr.bf16.gmra.mrb[0].mxu0 %v892
        %v991 = vpop.f32.mrb[0].mxu0
        %v992 = vadd.f32 %v442, %v991
        %v993 = vpop.f32.mrb[0].mxu0
        %v994 = vpop.f32.mrb[0].mxu0
        %v995 = vpop.f32.mrb[0].mxu0
        %996 = vdwg.mxu0
        %v997 = vld [vmem:[#allocation8 + $0x4] sm:$0x1]
        %v998 = vld [vmem:[#allocation8 + $0x5] sm:$0x1]
        %999 = vadd.xlane.f32.xlu0 %v992
        %v1000 = vpop.xlane.xlu0 %999
        %v1001 = vmul.f32 %v1000, 0.03125
        %v1002 = vmul.f32 %v992, %v992
        %1003 = vadd.xlane.f32.xlu0 %v1002
        %v1004 = vpop.xlane.xlu0 %1003
        %v1005 = vmul.f32 %v1004, 0.03125
        %v1006 = vmul.f32 %v1001, %v1001
        %v1007 = vsub.f32 %v1005, %v1006
        %v1008 = vsub.f32 %v992, %v1001
        %v1009 = vadd.f32 %v1007, 1e-06
        %v1010 = vrsqrt.pop %v1009
        %v1011 = vmul.f32 %v1008, %v1010
        %v1012 = vlaneseq
        %v1013 = vshrl.u32 %v1012, 7
        %v1014 = vsub.s32 0, %v1013
        %v1015 = vrot.slane %v997, %v1014
        %v1016 = vmul.f32 %v1011, %v1015
        %v1017 = vlaneseq
        %v1018 = vshrl.u32 %v1017, 7
        %v1019 = vsub.s32 0, %v1018
        %v1020 = vrot.slane %v998, %v1019
        %v1021 = vadd.f32 %v1016, %v1020
        %v1022 = vadd.f32 %v442, %v1021
        %v1023 = vld [vmem:[%s4] sm:$0xff]
        %v1024 = vld [vmem:[%s5] sm:$0xff]
        %vm1025 = vcmask 64512
        %v1027 = vsel %vm1025, %v1023, 0
        %1029 = vmatprep.subr.mxu0 0.0
        %1030 = vmatpush1.msra.mxu0 %v1022
        %1031 = vmatprep.subr.mxu0 0.0
        %1032 = vmatpush1.msra.mxu0 0.0
        %1033 = vmatprep.subr.mxu0 0.0
        %1034 = vmatpush1.msra.mxu0 0.0
        %1035 = vmatprep.subr.mxu0 0.0
        %1036 = vmatpush1.msra.mxu0 0.0
        %1037 = vmatprep.subr.mxu0 0.0
        %1038 = vmatpush1.msra.mxu0 0.0
        %1039 = vmatprep.subr.mxu0 0.0
        %1040 = vmatpush1.msra.mxu0 0.0
        %1041 = vmatprep.subr.mxu0 0.0
        %1042 = vmatpush1.msra.mxu0 0.0
        %1043 = vmatprep.subr.mxu0 0.0
        %1044 = vmatpush1.msra.mxu0 0.0
        %1045 = vmatprep.subr.mxu0 0.0
        %1046 = vmatpush1.msra.mxu0 0.0
        %1047 = vmatprep.subr.mxu0 0.0
        %1048 = vmatpush1.msra.mxu0 0.0
        %1049 = vmatprep.subr.mxu0 0.0
        %1050 = vmatpush1.msra.mxu0 0.0
        %1051 = vmatprep.subr.mxu0 0.0
        %1052 = vmatpush1.msra.mxu0 0.0
        %1053 = vmatprep.subr.mxu0 0.0
        %1054 = vmatpush1.msra.mxu0 0.0
        %1055 = vmatprep.subr.mxu0 0.0
        %1056 = vmatpush1.msra.mxu0 0.0
        %1057 = vmatprep.subr.mxu0 0.0
        %1058 = vmatpush1.msra.mxu0 0.0
        %1059 = vmatprep.subr.mxu0 0.0
        %1060 = vmatpush1.msra.mxu0 0.0
        %1061 = vmatprep.subr.mxu0 0.0
        %1062 = vmatpush1.msra.mxu0 0.0
        %1063 = vmatprep.subr.mxu0 0.0
        %1064 = vmatpush1.msra.mxu0 0.0
        %1065 = vmatprep.subr.mxu0 0.0
        %1066 = vmatpush1.msra.mxu0 0.0
        %1067 = vmatprep.subr.mxu0 0.0
        %1068 = vmatpush1.msra.mxu0 0.0
        %1069 = vmatprep.subr.mxu0 0.0
        %1070 = vmatpush1.msra.mxu0 0.0
        %1071 = vmatprep.subr.mxu0 0.0
        %1072 = vmatpush1.msra.mxu0 0.0
        %1073 = vmatprep.subr.mxu0 0.0
        %1074 = vmatpush1.msra.mxu0 0.0
        %1075 = vmatprep.subr.mxu0 0.0
        %1076 = vmatpush1.msra.mxu0 0.0
        %1077 = vmatprep.subr.mxu0 0.0
        %1078 = vmatpush1.msra.mxu0 0.0
        %1079 = vmatprep.subr.mxu0 0.0
        %1080 = vmatpush1.msra.mxu0 0.0
        %1081 = vmatprep.subr.mxu0 0.0
        %1082 = vmatpush1.msra.mxu0 0.0
        %1083 = vmatprep.subr.mxu0 0.0
        %1084 = vmatpush1.msra.mxu0 0.0
        %1085 = vmatprep.subr.mxu0 0.0
        %1086 = vmatpush1.msra.mxu0 0.0
        %1087 = vmatprep.subr.mxu0 0.0
        %1088 = vmatpush1.msra.mxu0 0.0
        %1089 = vmatprep.subr.mxu0 0.0
        %1090 = vmatpush1.msra.mxu0 0.0
        %1091 = vmatprep.subr.mxu0 0.0
        %1092 = vmatpush1.msra.mxu0 0.0
        %1093 = vmatprep.mubr.f32.mxu0 0.0
        %1094 = vmatmul.mubr.f32.gmra.mrb[0].mxu0 %v1027
        %v1095 = vpop.f32.mrb[0].mxu0
        %v1096 = vadd.f32 %v1024, %v1095
        %v1097 = vpop.f32.mrb[0].mxu0
        %1098 = vdwg.mxu0
        %v1099 = vadd.f32 %v1022, %v1096
        %v1100 = vld [vmem:[#allocation7 + $0x14] sm:$0xf]
        %v1101 = vld [vmem:[#allocation7 + $0x44] sm:$0xf]
        %v1102 = vld [vmem:[#allocation7 + $0x74] sm:$0xf]
        %v1103 = vld [vmem:[#allocation7 + $0xa4] sm:$0xf]
        %v1104 = vld [vmem:[#allocation7 + $0xd4] sm:$0xf]
        %v1105 = vld [vmem:[#allocation7 + $0x104] sm:$0xf]
        %v1106 = vld [vmem:[#allocation7 + $0x134] sm:$0xf]
        %v1107 = vld [vmem:[#allocation7 + $0x164] sm:$0xf]
        %v1108 = vld [vmem:[#allocation7 + $0x194] sm:$0xf]
        %v1109 = vld [vmem:[#allocation7 + $0x1c4] sm:$0xf]
        %v1110 = vld [vmem:[#allocation7 + $0x1f4] sm:$0xf]
        %v1111 = vld [vmem:[#allocation7 + $0x224] sm:$0xf]
        %v1112 = vld [vmem:[#allocation7 + $0x254] sm:$0xf]
        %v1113 = vld [vmem:[#allocation7 + $0x284] sm:$0xf]
        %v1114 = vld [vmem:[#allocation7 + $0x2b4] sm:$0xf]
        %v1115 = vld [vmem:[#allocation7 + $0x2e4] sm:$0xf]
        %v1116 = vld [vmem:[#allocation8 + $0x6] sm:$0x1]
        %v1117 = vld [vmem:[#allocation7 + $0x18] sm:$0xf]
        %v1118 = vld [vmem:[#allocation7 + $0x48] sm:$0xf]
        %v1119 = vld [vmem:[#allocation7 + $0x78] sm:$0xf]
        %v1120 = vld [vmem:[#allocation7 + $0xa8] sm:$0xf]
        %v1121 = vld [vmem:[#allocation7 + $0xd8] sm:$0xf]
        %v1122 = vld [vmem:[#allocation7 + $0x108] sm:$0xf]
        %v1123 = vld [vmem:[#allocation7 + $0x138] sm:$0xf]
        %v1124 = vld [vmem:[#allocation7 + $0x168] sm:$0xf]
        %v1125 = vld [vmem:[#allocation7 + $0x198] sm:$0xf]
        %v1126 = vld [vmem:[#allocation7 + $0x1c8] sm:$0xf]
        %v1127 = vld [vmem:[#allocation7 + $0x1f8] sm:$0xf]
        %v1128 = vld [vmem:[#allocation7 + $0x228] sm:$0xf]
        %v1129 = vld [vmem:[#allocation7 + $0x258] sm:$0xf]
        %v1130 = vld [vmem:[#allocation7 + $0x288] sm:$0xf]
        %v1131 = vld [vmem:[#allocation7 + $0x2b8] sm:$0xf]
        %v1132 = vld [vmem:[#allocation7 + $0x2e8] sm:$0xf]
        %v1133 = vld [vmem:[#allocation8 + $0x7] sm:$0x1]
        %v1134 = vpack.c.bf16 %v1099, %v1099
        %v1135 = vlaneseq
        %v1136 = vshrl.u32 %v1135, 7
        %v1137 = vsub.s32 0, %v1136
        %v1138 = vrot.slane %v1116, %v1137
        %v1155 = vunpack.c.l.b16 %v1100
        %v1156 = vunpack.c.l.b16 %v1101
        %v1157 = vunpack.c.l.b16 %v1102
        %v1158 = vunpack.c.l.b16 %v1103
        %v1159 = vunpack.c.l.b16 %v1104
        %v1160 = vunpack.c.l.b16 %v1105
        %v1161 = vunpack.c.l.b16 %v1106
        %v1162 = vunpack.c.l.b16 %v1107
        %v1163 = vunpack.c.l.b16 %v1108
        %v1164 = vunpack.c.l.b16 %v1109
        %v1165 = vunpack.c.l.b16 %v1110
        %v1166 = vunpack.c.l.b16 %v1111
        %v1167 = vunpack.c.l.b16 %v1112
        %v1168 = vunpack.c.l.b16 %v1113
        %v1169 = vunpack.c.l.b16 %v1114
        %v1170 = vunpack.c.l.b16 %v1115
        %v1171 = vpack.c.b16 %v1156, %v1155
        %v1172 = vpack.c.b16 %v1158, %v1157
        %v1173 = vpack.c.b16 %v1160, %v1159
        %v1174 = vpack.c.b16 %v1162, %v1161
        %v1175 = vpack.c.b16 %v1164, %v1163
        %v1176 = vpack.c.b16 %v1166, %v1165
        %v1177 = vpack.c.b16 %v1168, %v1167
        %v1178 = vpack.c.b16 %v1170, %v1169
        %1187 = vmatprep.subr.bf16.mxu0 0
        %1188 = vmatpush1.bf16.msra.mxu0 %v1171
        %1189 = vmatprep.subr.bf16.mxu0 0
        %1190 = vmatpush1.bf16.msra.mxu0 %v1172
        %1191 = vmatprep.subr.bf16.mxu0 0
        %1192 = vmatpush1.bf16.msra.mxu0 %v1173
        %1193 = vmatprep.subr.bf16.mxu0 0
        %1194 = vmatpush1.bf16.msra.mxu0 %v1174
        %1195 = vmatprep.subr.bf16.mxu0 0
        %1196 = vmatpush1.bf16.msra.mxu0 %v1175
        %1197 = vmatprep.subr.bf16.mxu0 0
        %1198 = vmatpush1.bf16.msra.mxu0 %v1176
        %1199 = vmatprep.subr.bf16.mxu0 0
        %1200 = vmatpush1.bf16.msra.mxu0 %v1177
        %1201 = vmatprep.subr.bf16.mxu0 0
        %1202 = vmatpush1.bf16.msra.mxu0 %v1178
        %1203 = vmatprep.subr.bf16.mxu0 0
        %1204 = vmatpush1.bf16.msra.mxu0 0
        %1205 = vmatprep.subr.bf16.mxu0 0
        %1206 = vmatpush1.bf16.msra.mxu0 0
        %1207 = vmatprep.subr.bf16.mxu0 0
        %1208 = vmatpush1.bf16.msra.mxu0 0
        %1209 = vmatprep.subr.bf16.mxu0 0
        %1210 = vmatpush1.bf16.msra.mxu0 0
        %1211 = vmatprep.subr.bf16.mxu0 0
        %1212 = vmatpush1.bf16.msra.mxu0 0
        %1213 = vmatprep.subr.bf16.mxu0 0
        %1214 = vmatpush1.bf16.msra.mxu0 0
        %1215 = vmatprep.subr.bf16.mxu0 0
        %1216 = vmatpush1.bf16.msra.mxu0 0
        %1217 = vmatprep.subr.bf16.mxu0 0
        %1218 = vmatpush1.bf16.msra.mxu0 0
        %1219 = vmatprep.mubr.bf16.mxu0 0
        %1220 = vmatmul.mubr.bf16.gmra.mrb[0].mxu0 %v1134
        %v1221 = vpop.f32.mrb[0].mxu0
        %v1222 = vadd.f32 %v1138, %v1221
        %v1223 = vpop.f32.mrb[0].mxu0
        %v1224 = vpop.f32.mrb[0].mxu0
        %v1225 = vpop.f32.mrb[0].mxu0
        %1226 = vdwg.mxu0
        %v1227 = vmul.f32 %v1222, 0.5
        %v1228 = vmul.f32 %v1222, 0.044715
        %v1229 = vmul.f32 %v1228, %v1222
        %v1230 = vmul.f32 %v1229, %v1222
        %v1231 = vadd.f32 %v1222, %v1230
        %v1232 = vmul.f32 %v1231, 0.7978846
        %v1233 = vtanh.pop %v1232
        %v1234 = vadd.f32 %v1233, 1.0
        %v1235 = vmul.f32 %v1227, %v1234
        %v1236 = vpack.c.bf16 %v1235, %v1235
        %v1237 = vlaneseq
        %v1238 = vshrl.u32 %v1237, 7
        %v1239 = vsub.s32 0, %v1238
        %v1240 = vrot.slane %v1133, %v1239
        %v1257 = vunpack.c.l.b16 %v1117
        %v1258 = vunpack.c.l.b16 %v1118
        %v1259 = vunpack.c.l.b16 %v1119
        %v1260 = vunpack.c.l.b16 %v1120
        %v1261 = vunpack.c.l.b16 %v1121
        %v1262 = vunpack.c.l.b16 %v1122
        %v1263 = vunpack.c.l.b16 %v1123
        %v1264 = vunpack.c.l.b16 %v1124
        %v1265 = vunpack.c.l.b16 %v1125
        %v1266 = vunpack.c.l.b16 %v1126
        %v1267 = vunpack.c.l.b16 %v1127
        %v1268 = vunpack.c.l.b16 %v1128
        %v1269 = vunpack.c.l.b16 %v1129
        %v1270 = vunpack.c.l.b16 %v1130
        %v1271 = vunpack.c.l.b16 %v1131
        %v1272 = vunpack.c.l.b16 %v1132
        %v1273 = vpack.c.b16 %v1258, %v1257
        %v1274 = vpack.c.b16 %v1260, %v1259
        %v1275 = vpack.c.b16 %v1262, %v1261
        %v1276 = vpack.c.b16 %v1264, %v1263
        %v1277 = vpack.c.b16 %v1266, %v1265
        %v1278 = vpack.c.b16 %v1268, %v1267
        %v1279 = vpack.c.b16 %v1270, %v1269
        %v1280 = vpack.c.b16 %v1272, %v1271
        %1289 = vmatprep.subr.bf16.mxu0 0
        %1290 = vmatpush1.bf16.msra.mxu0 %v1273
        %1291 = vmatprep.subr.bf16.mxu0 0
        %1292 = vmatpush1.bf16.msra.mxu0 %v1274
        %1293 = vmatprep.subr.bf16.mxu0 0
        %1294 = vmatpush1.bf16.msra.mxu0 %v1275
        %1295 = vmatprep.subr.bf16.mxu0 0
        %1296 = vmatpush1.bf16.msra.mxu0 %v1276
        %1297 = vmatprep.subr.bf16.mxu0 0
        %1298 = vmatpush1.bf16.msra.mxu0 %v1277
        %1299 = vmatprep.subr.bf16.mxu0 0
        %1300 = vmatpush1.bf16.msra.mxu0 %v1278
        %1301 = vmatprep.subr.bf16.mxu0 0
        %1302 = vmatpush1.bf16.msra.mxu0 %v1279
        %1303 = vmatprep.subr.bf16.mxu0 0
        %1304 = vmatpush1.bf16.msra.mxu0 %v1280
        %1305 = vmatprep.subr.bf16.mxu0 0
        %1306 = vmatpush1.bf16.msra.mxu0 0
        %1307 = vmatprep.subr.bf16.mxu0 0
        %1308 = vmatpush1.bf16.msra.mxu0 0
        %1309 = vmatprep.subr.bf16.mxu0 0
        %1310 = vmatpush1.bf16.msra.mxu0 0
        %1311 = vmatprep.subr.bf16.mxu0 0
        %1312 = vmatpush1.bf16.msra.mxu0 0
        %1313 = vmatprep.subr.bf16.mxu0 0
        %1314 = vmatpush1.bf16.msra.mxu0 0
        %1315 = vmatprep.subr.bf16.mxu0 0
        %1316 = vmatpush1.bf16.msra.mxu0 0
        %1317 = vmatprep.subr.bf16.mxu0 0
        %1318 = vmatpush1.bf16.msra.mxu0 0
        %1319 = vmatprep.subr.bf16.mxu0 0
        %1320 = vmatpush1.bf16.msra.mxu0 0
        %1321 = vmatprep.mubr.bf16.mxu0 0
        %1322 = vmatmul.mubr.bf16.gmra.mrb[0].mxu0 %v1236
        %v1323 = vpop.f32.mrb[0].mxu0
        %v1324 = vadd.f32 %v1240, %v1323
        %v1325 = vpop.f32.mrb[0].mxu0
        %v1326 = vpop.f32.mrb[0].mxu0
        %v1327 = vpop.f32.mrb[0].mxu0
        %1328 = vdwg.mxu0
        %v1329 = vadd.f32 %v1099, %v1324
        %1330 = vst [vmem:[%s366] sm:$0xff] %v1329
        %v1331 = vld [vmem:[#allocation8 + $0x8] sm:$0x1]
        %v1332 = vld [vmem:[#allocation8 + $0x9] sm:$0x1]
        %1333 = vadd.xlane.f32.xlu0 %v1329
        %v1334 = vpop.xlane.xlu0 %1333
        %v1335 = vmul.f32 %v1334, 0.03125
        %v1336 = vmul.f32 %v1329, %v1329
        %1337 = vadd.xlane.f32.xlu0 %v1336
        %v1338 = vpop.xlane.xlu0 %1337
        %v1339 = vmul.f32 %v1338, 0.03125
        %v1340 = vmul.f32 %v1335, %v1335
        %v1341 = vsub.f32 %v1339, %v1340
        %v1342 = vsub.f32 %v1329, %v1335
        %v1343 = vadd.f32 %v1341, 1e-05
        %v1344 = vrsqrt.pop %v1343
        %v1345 = vmul.f32 %v1342, %v1344
        %v1346 = vlaneseq
        %v1347 = vshrl.u32 %v1346, 7
        %v1348 = vsub.s32 0, %v1347
        %v1349 = vrot.slane %v1331, %v1348
        %v1350 = vmul.f32 %v1345, %v1349
        %v1351 = vlaneseq
        %v1352 = vshrl.u32 %v1351, 7
        %v1353 = vsub.s32 0, %v1352
        %v1354 = vrot.slane %v1332, %v1353
        %v1355 = vadd.f32 %v1350, %v1354
        %v1356 = vpack.c.bf16 %v1355, %v1355
        %v1357 = vld [vmem:[#allocation7 + $0x1c] sm:$0xff]
        %v1358 = vld [vmem:[#allocation7 + $0x4c] sm:$0xff]
        %v1359 = vld [vmem:[#allocation7 + $0x7c] sm:$0xff]
        %v1360 = vld [vmem:[#allocation7 + $0xac] sm:$0xff]
        %v1361 = vld [vmem:[#allocation7 + $0xdc] sm:$0xff]
        %v1362 = vld [vmem:[#allocation7 + $0x10c] sm:$0xff]
        %v1363 = vld [vmem:[#allocation7 + $0x13c] sm:$0xff]
        %v1364 = vld [vmem:[#allocation7 + $0x16c] sm:$0xff]
        %v1365 = vld [vmem:[#allocation7 + $0x19c] sm:$0xff]
        %v1366 = vld [vmem:[#allocation7 + $0x1cc] sm:$0xff]
        %v1367 = vld [vmem:[#allocation7 + $0x1fc] sm:$0xff]
        %v1368 = vld [vmem:[#allocation7 + $0x22c] sm:$0xff]
        %v1369 = vld [vmem:[#allocation7 + $0x25c] sm:$0xff]
        %v1370 = vld [vmem:[#allocation7 + $0x28c] sm:$0xff]
        %v1371 = vld [vmem:[#allocation7 + $0x2bc] sm:$0xff]
        %v1372 = vld [vmem:[#allocation7 + $0x2ec] sm:$0xff]
        %v1389 = vunpack.c.l.b16 %v1357
        %v1390 = vunpack.c.h.b16 %v1357
        %v1391 = vunpack.c.l.b16 %v1358
        %v1392 = vunpack.c.h.b16 %v1358
        %v1393 = vunpack.c.l.b16 %v1359
        %v1394 = vunpack.c.h.b16 %v1359
        %v1395 = vunpack.c.l.b16 %v1360
        %v1396 = vunpack.c.h.b16 %v1360
        %v1397 = vunpack.c.l.b16 %v1361
        %v1398 = vunpack.c.h.b16 %v1361
        %v1399 = vunpack.c.l.b16 %v1362
        %v1400 = vunpack.c.h.b16 %v1362
        %v1401 = vunpack.c.l.b16 %v1363
        %v1402 = vunpack.c.h.b16 %v1363
        %v1403 = vunpack.c.l.b16 %v1364
        %v1404 = vunpack.c.h.b16 %v1364
        %v1405 = vunpack.c.l.b16 %v1365
        %v1406 = vunpack.c.h.b16 %v1365
        %v1407 = vunpack.c.l.b16 %v1366
        %v1408 = vunpack.c.h.b16 %v1366
        %v1409 = vunpack.c.l.b16 %v1367
        %v1410 = vunpack.c.h.b16 %v1367
        %v1411 = vunpack.c.l.b16 %v1368
        %v1412 = vunpack.c.h.b16 %v1368
        %v1413 = vunpack.c.l.b16 %v1369
        %v1414 = vunpack.c.h.b16 %v1369
        %v1415 = vunpack.c.l.b16 %v1370
        %v1416 = vunpack.c.h.b16 %v1370
        %v1417 = vunpack.c.l.b16 %v1371
        %v1418 = vunpack.c.h.b16 %v1371
        %v1419 = vunpack.c.l.b16 %v1372
        %v1420 = vunpack.c.h.b16 %v1372
        %v1421 = vpack.c.b16 %v1391, %v1389
        %v1422 = vpack.c.b16 %v1392, %v1390
        %v1423 = vpack.c.b16 %v1395, %v1393
        %v1424 = vpack.c.b16 %v1396, %v1394
        %v1425 = vpack.c.b16 %v1399, %v1397
        %v1426 = vpack.c.b16 %v1400, %v1398
        %v1427 = vpack.c.b16 %v1403, %v1401
        %v1428 = vpack.c.b16 %v1404, %v1402
        %v1429 = vpack.c.b16 %v1407, %v1405
        %v1430 = vpack.c.b16 %v1408, %v1406
        %v1431 = vpack.c.b16 %v1411, %v1409
        %v1432 = vpack.c.b16 %v1412, %v1410
        %v1433 = vpack.c.b16 %v1415, %v1413
        %v1434 = vpack.c.b16 %v1416, %v1414
        %v1435 = vpack.c.b16 %v1419, %v1417
        %v1436 = vpack.c.b16 %v1420, %v1418
        %1453 = vmatprep.subr.bf16.mxu0 %v1422
        %1454 = vmatpush1.bf16.msra.mxu0 %v1421
        %1455 = vmatprep.subr.bf16.mxu0 %v1424
        %1456 = vmatpush1.bf16.msra.mxu0 %v1423
        %1457 = vmatprep.subr.bf16.mxu0 %v1426
        %1458 = vmatpush1.bf16.msra.mxu0 %v1425
        %1459 = vmatprep.subr.bf16.mxu0 %v1428
        %1460 = vmatpush1.bf16.msra.mxu0 %v1427
        %1461 = vmatprep.subr.bf16.mxu0 %v1430
        %1462 = vmatpush1.bf16.msra.mxu0 %v1429
        %1463 = vmatprep.subr.bf16.mxu0 %v1432
        %1464 = vmatpush1.bf16.msra.mxu0 %v1431
        %1465 = vmatprep.subr.bf16.mxu0 %v1434
        %1466 = vmatpush1.bf16.msra.mxu0 %v1433
        %1467 = vmatprep.subr.bf16.mxu0 %v1436
        %1468 = vmatpush1.bf16.msra.mxu0 %v1435
        %1469 = vmatprep.subr.bf16.mxu0 0
        %1470 = vmatpush1.bf16.msra.mxu0 0
        %1471 = vmatprep.subr.bf16.mxu0 0
        %1472 = vmatpush1.bf16.msra.mxu0 0
        %1473 = vmatprep.subr.bf16.mxu0 0
        %1474 = vmatpush1.bf16.msra.mxu0 0
        %1475 = vmatprep.subr.bf16.mxu0 0
        %1476 = vmatpush1.bf16.msra.mxu0 0
        %1477 = vmatprep.subr.bf16.mxu0 0
        %1478 = vmatpush1.bf16.msra.mxu0 0
        %1479 = vmatprep.subr.bf16.mxu0 0
        %1480 = vmatpush1.bf16.msra.mxu0 0
        %1481 = vmatprep.subr.bf16.mxu0 0
        %1482 = vmatpush1.bf16.msra.mxu0 0
        %1483 = vmatprep.subr.bf16.mxu0 0
        %1484 = vmatpush1.bf16.msra.mxu0 0
        %1485 = vmatprep.mubr.bf16.mxu0 0
        %1486 = vmatmul.mubr.bf16.gmra.mrb[0].mxu0 %v1356
        %v1487 = vpop.f32.mrb[0].mxu0
        %v1488 = vadd.f32 0.0, %v1487
        %v1489 = vpop.f32.mrb[0].mxu0
        %v1490 = vadd.f32 0.0, %v1489
        %v1491 = vpop.f32.mrb[0].mxu0
        %v1492 = vpop.f32.mrb[0].mxu0
        %1493 = vdwg.mxu0
        %v1494 = vpack.c.bf16 %v685, %v682
        %v1495 = vpack.c.bf16 %v1488, %v1488
        %v1496 = vpack.c.bf16 %v1490, %v1490
        %1497 = vmatprep.subr.bf16.mxu0 0
        %1498 = vmatpush1.bf16.xpose.msra.mxu0 %v1495
        %1499 = vmatprep.subr.bf16.mxu0 0
        %1500 = vmatpush1.bf16.xpose.msra.mxu0 0
        %1501 = vmatprep.subr.bf16.mxu0 0
        %1502 = vmatpush1.bf16.xpose.msra.mxu0 0
        %1503 = vmatprep.subr.bf16.mxu0 0
        %1504 = vmatpush1.bf16.xpose.msra.mxu0 0
        %1505 = vmatprep.subr.bf16.mxu0 0
        %1506 = vmatpush1.bf16.xpose.msra.mxu0 0
        %1507 = vmatprep.subr.bf16.mxu0 0
        %1508 = vmatpush1.bf16.xpose.msra.mxu0 0
        %1509 = vmatprep.subr.bf16.mxu0 0
        %1510 = vmatpush1.bf16.xpose.msra.mxu0 0
        %1511 = vmatprep.subr.bf16.mxu0 0
        %1512 = vmatpush1.bf16.xpose.msra.mxu0 0
        %1513 = vmatprep.subr.bf16.mxu0 0
        %1514 = vmatpush1.bf16.xpose.msra.mxu0 0
        %1515 = vmatprep.subr.bf16.mxu0 0
        %1516 = vmatpush1.bf16.xpose.msra.mxu0 0
        %1517 = vmatprep.subr.bf16.mxu0 0
        %1518 = vmatpush1.bf16.xpose.msra.mxu0 0
        %1519 = vmatprep.subr.bf16.mxu0 0
        %1520 = vmatpush1.bf16.xpose.msra.mxu0 0
        %1521 = vmatprep.subr.bf16.mxu0 0
        %1522 = vmatpush1.bf16.xpose.msra.mxu0 0
        %1523 = vmatprep.subr.bf16.mxu0 0
        %1524 = vmatpush1.bf16.xpose.msra.mxu0 0
        %1525 = vmatprep.subr.bf16.mxu0 0
        %1526 = vmatpush1.bf16.xpose.msra.mxu0 0
        %1527 = vmatprep.subr.bf16.mxu0 0
        %1528 = vmatpush1.bf16.xpose.msra.mxu0 0
        %1529 = vmatprep.mubr.bf16.mxu0 0
        %1530 = vmatmul.mubr.bf16.gmra.mrb[0].mxu0 %v1494
        %v1531 = vpop.f32.mrb[0].mxu0
        %v1532 = vadd.f32 0.0, %v1531
        %v1533 = vpop.f32.mrb[0].mxu0
        %v1534 = vpop.f32.mrb[0].mxu0
        %v1535 = vadd.f32 0.0, %v1534
        %v1536 = vpop.f32.mrb[0].mxu0
        %1537 = vdwg.mxu0
        %v1538 = vsel %vm1025, %v1532, -inf
        %1539 = vmax.xlane.f32.xlu0 %v1538
        %v1540 = vpop.xlane.xlu0 %1539
        %v1541 = vsel %vm1025, %v1535, -inf
        %1542 = vmax.xlane.f32.xlu0 %v1541
        %v1543 = vpop.xlane.xlu0 %1542
        %v1544 = vsub.f32 %v1532, %v1540
        %v1545 = vsub.f32 %v1535, %v1543
        %v1546 = vmul.f32 %v1544, 1.442695
        %v1547 = vpow.pop %v1546
        %v1548 = vmul.f32 %v1545, 1.442695
        %v1549 = vpow.pop %v1548
        %v1550 = vsel %vm1025, %v1547, 0.0
        %1551 = vadd.xlane.f32.xlu0 %v1550
        %v1552 = vpop.xlane.xlu0 %1551
        %v1553 = vsel %vm1025, %v1549, 0.0
        %1554 = vadd.xlane.f32.xlu0 %v1553
        %v1555 = vpop.xlane.xlu0 %1554
        %v1556 = vrcp.pop %v1552
        %v1557 = vrcp.pop %v1555
        %v1558 = vmul.f32 %v1547, %v1556
        %v1559 = vmul.f32 %v1549, %v1557
        %v1560 = vpack.c.bf16 %v1559, %v1558
        %v1562 = vsel %vm1025, %v1560, 0
        %vm1564 = vcmask 1043456
        %v1566 = vsel %vm1564, %v1496, 0
        %1568 = vmatprep.subr.bf16.mxu0 0
        %1569 = vmatpush1.bf16.msra.mxu0 %v1566
        %1570 = vmatprep.subr.bf16.mxu0 0
        %1571 = vmatpush1.bf16.msra.mxu0 0
        %1572 = vmatprep.subr.bf16.mxu0 0
        %1573 = vmatpush1.bf16.msra.mxu0 0
        %1574 = vmatprep.subr.bf16.mxu0 0
        %1575 = vmatpush1.bf16.msra.mxu0 0
        %1576 = vmatprep.subr.bf16.mxu0 0
        %1577 = vmatpush1.bf16.msra.mxu0 0
        %1578 = vmatprep.subr.bf16.mxu0 0
        %1579 = vmatpush1.bf16.msra.mxu0 0
        %1580 = vmatprep.subr.bf16.mxu0 0
        %1581 = vmatpush1.bf16.msra.mxu0 0
        %1582 = vmatprep.subr.bf16.mxu0 0
        %1583 = vmatpush1.bf16.msra.mxu0 0
        %1584 = vmatprep.subr.bf16.mxu0 0
        %1585 = vmatpush1.bf16.msra.mxu0 0
        %1586 = vmatprep.subr.bf16.mxu0 0
        %1587 = vmatpush1.bf16.msra.mxu0 0
        %1588 = vmatprep.subr.bf16.mxu0 0
        %1589 = vmatpush1.bf16.msra.mxu0 0
        %1590 = vmatprep.subr.bf16.mxu0 0
        %1591 = vmatpush1.bf16.msra.mxu0 0
        %1592 = vmatprep.subr.bf16.mxu0 0
        %1593 = vmatpush1.bf16.msra.mxu0 0
        %1594 = vmatprep.subr.bf16.mxu0 0
        %1595 = vmatpush1.bf16.msra.mxu0 0
        %1596 = vmatprep.subr.bf16.mxu0 0
        %1597 = vmatpush1.bf16.msra.mxu0 0
        %1598 = vmatprep.subr.bf16.mxu0 0
        %1599 = vmatpush1.bf16.msra.mxu0 0
        %1600 = vmatprep.mubr.bf16.mxu0 0
        %1601 = vmatmul.mubr.bf16.gmra.mrb[0].mxu0 %v1562
        %v1602 = vpop.f32.mrb[0].mxu0
        %v1603 = vadd.f32 0.0, %v1602
        %v1604 = vpop.f32.mrb[0].mxu0
        %v1605 = vpop.f32.mrb[0].mxu0
        %v1606 = vadd.f32 0.0, %v1605
        %v1607 = vpop.f32.mrb[0].mxu0
        %1608 = vdwg.mxu0
        %v1609 = vpack.c.bf16 %v1606, %v1603
        %v1610 = vld [vmem:[#allocation7 + $0x24] sm:$0xf]
        %v1611 = vld [vmem:[#allocation7 + $0x54] sm:$0xf]
        %v1612 = vld [vmem:[#allocation7 + $0x84] sm:$0xf]
        %v1613 = vld [vmem:[#allocation7 + $0xb4] sm:$0xf]
        %v1614 = vld [vmem:[#allocation7 + $0xe4] sm:$0xf]
        %v1615 = vld [vmem:[#allocation7 + $0x114] sm:$0xf]
        %v1616 = vld [vmem:[#allocation7 + $0x144] sm:$0xf]
        %v1617 = vld [vmem:[#allocation7 + $0x174] sm:$0xf]
        %v1618 = vld [vmem:[#allocation7 + $0x1a4] sm:$0xf]
        %v1619 = vld [vmem:[#allocation7 + $0x1d4] sm:$0xf]
        %v1620 = vld [vmem:[#allocation7 + $0x204] sm:$0xf]
        %v1621 = vld [vmem:[#allocation7 + $0x234] sm:$0xf]
        %v1622 = vld [vmem:[#allocation7 + $0x264] sm:$0xf]
        %v1623 = vld [vmem:[#allocation7 + $0x294] sm:$0xf]
        %v1624 = vld [vmem:[#allocation7 + $0x2c4] sm:$0xf]
        %v1625 = vld [vmem:[#allocation7 + $0x2f4] sm:$0xf]
        %v1642 = vunpack.c.l.b16 %v1610
        %v1643 = vunpack.c.l.b16 %v1611
        %v1644 = vunpack.c.l.b16 %v1612
        %v1645 = vunpack.c.l.b16 %v1613
        %v1646 = vunpack.c.l.b16 %v1614
        %v1647 = vunpack.c.l.b16 %v1615
        %v1648 = vunpack.c.l.b16 %v1616
        %v1649 = vunpack.c.l.b16 %v1617
        %v1650 = vunpack.c.l.b16 %v1618
        %v1651 = vunpack.c.l.b16 %v1619
        %v1652 = vunpack.c.l.b16 %v1620
        %v1653 = vunpack.c.l.b16 %v1621
        %v1654 = vunpack.c.l.b16 %v1622
        %v1655 = vunpack.c.l.b16 %v1623
        %v1656 = vunpack.c.l.b16 %v1624
        %v1657 = vunpack.c.l.b16 %v1625
        %v1658 = vpack.c.b16 %v1643, %v1642
        %v1659 = vpack.c.b16 %v1645, %v1644
        %v1660 = vpack.c.b16 %v1647, %v1646
        %v1661 = vpack.c.b16 %v1649, %v1648
        %v1662 = vpack.c.b16 %v1651, %v1650
        %v1663 = vpack.c.b16 %v1653, %v1652
        %v1664 = vpack.c.b16 %v1655, %v1654
        %v1665 = vpack.c.b16 %v1657, %v1656
        %1674 = vmatprep.subr.bf16.mxu0 0
        %1675 = vmatpush1.bf16.msra.mxu0 %v1658
        %1676 = vmatprep.subr.bf16.mxu0 0
        %1677 = vmatpush1.bf16.msra.mxu0 %v1659
        %1678 = vmatprep.subr.bf16.mxu0 0
        %1679 = vmatpush1.bf16.msra.mxu0 %v1660
        %1680 = vmatprep.subr.bf16.mxu0 0
        %1681 = vmatpush1.bf16.msra.mxu0 %v1661
        %1682 = vmatprep.subr.bf16.mxu0 0
        %1683 = vmatpush1.bf16.msra.mxu0 %v1662
        %1684 = vmatprep.subr.bf16.mxu0 0
        %1685 = vmatpush1.bf16.msra.mxu0 %v1663
        %1686 = vmatprep.subr.bf16.mxu0 0
        %1687 = vmatpush1.bf16.msra.mxu0 %v1664
        %1688 = vmatprep.subr.bf16.mxu0 0
        %1689 = vmatpush1.bf16.msra.mxu0 %v1665
        %1690 = vmatprep.subr.bf16.mxu0 0
        %1691 = vmatpush1.bf16.msra.mxu0 0
        %1692 = vmatprep.subr.bf16.mxu0 0
        %1693 = vmatpush1.bf16.msra.mxu0 0
        %1694 = vmatprep.subr.bf16.mxu0 0
        %1695 = vmatpush1.bf16.msra.mxu0 0
        %1696 = vmatprep.subr.bf16.mxu0 0
        %1697 = vmatpush1.bf16.msra.mxu0 0
        %1698 = vmatprep.subr.bf16.mxu0 0
        %1699 = vmatpush1.bf16.msra.mxu0 0
        %1700 = vmatprep.subr.bf16.mxu0 0
        %1701 = vmatpush1.bf16.msra.mxu0 0
        %1702 = vmatprep.subr.bf16.mxu0 0
        %1703 = vmatpush1.bf16.msra.mxu0 0
        %1704 = vmatprep.subr.bf16.mxu0 0
        %1705 = vmatpush1.bf16.msra.mxu0 0
        %1706 = vmatprep.mubr.bf16.mxu0 0
        %1707 = vmatmul.mubr.bf16.gmra.mrb[0].mxu0 %v1609
        %v1708 = vpop.f32.mrb[0].mxu0
        %v1709 = vadd.f32 %v416, %v1708
        %v1710 = vpop.f32.mrb[0].mxu0
        %v1711 = vpop.f32.mrb[0].mxu0
        %v1712 = vadd.f32 %v417, %v1711
        %v1713 = vpop.f32.mrb[0].mxu0
        %1714 = vdwg.mxu0
        %v1715 = vld [vmem:[#allocation8 + $0xa] sm:$0x1]
        %v1716 = vld [vmem:[#allocation8 + $0xb] sm:$0x1]
        %1717 = vadd.xlane.f32.xlu0 %v1709
        %v1718 = vpop.xlane.xlu0 %1717
        %1719 = vadd.xlane.f32.xlu0 %v1712
        %v1720 = vpop.xlane.xlu0 %1719
        %v1721 = vmul.f32 %v1718, 0.03125
        %v1722 = vmul.f32 %v1720, 0.03125
        %v1723 = vmul.f32 %v1709, %v1709
        %v1724 = vmul.f32 %v1712, %v1712
        %1725 = vadd.xlane.f32.xlu0 %v1723
        %v1726 = vpop.xlane.xlu0 %1725
        %1727 = vadd.xlane.f32.xlu0 %v1724
        %v1728 = vpop.xlane.xlu0 %1727
        %v1729 = vmul.f32 %v1726, 0.03125
        %v1730 = vmul.f32 %v1728, 0.03125
        %v1731 = vmul.f32 %v1721, %v1721
        %v1732 = vmul.f32 %v1722, %v1722
        %v1733 = vsub.f32 %v1729, %v1731
        %v1734 = vsub.f32 %v1730, %v1732
        %v1735 = vsub.f32 %v1709, %v1721
        %v1736 = vsub.f32 %v1712, %v1722
        %v1737 = vadd.f32 %v1733, 1e-06
        %v1738 = vadd.f32 %v1734, 1e-06
        %v1739 = vrsqrt.pop %v1737
        %v1740 = vrsqrt.pop %v1738
        %v1741 = vmul.f32 %v1735, %v1739
        %v1742 = vmul.f32 %v1736, %v1740
        %v1743 = vlaneseq
        %v1744 = vshrl.u32 %v1743, 7
        %v1745 = vsub.s32 0, %v1744
        %v1746 = vrot.slane %v1715, %v1745
        %v1747 = vmul.f32 %v1741, %v1746
        %v1748 = vmul.f32 %v1742, %v1746
        %v1749 = vlaneseq
        %v1750 = vshrl.u32 %v1749, 7
        %v1751 = vsub.s32 0, %v1750
        %v1752 = vrot.slane %v1716, %v1751
        %v1753 = vadd.f32 %v1747, %v1752
        %v1754 = vadd.f32 %v1748, %v1752
        %v1755 = vadd.f32 %v416, %v1753
        %v1756 = vadd.f32 %v417, %v1754
        %v1757 = vmul.f32 %v1755, 2.0
        %v1758 = vmul.f32 %v1756, 2.0
        %v1759 = vld [vmem:[#allocation7 + $0x28] sm:$0xf]
        %v1760 = vld [vmem:[#allocation7 + $0x58] sm:$0xf]
        %v1761 = vld [vmem:[#allocation7 + $0x88] sm:$0xf]
        %v1762 = vld [vmem:[#allocation7 + $0xb8] sm:$0xf]
        %v1763 = vld [vmem:[#allocation7 + $0xe8] sm:$0xf]
        %v1764 = vld [vmem:[#allocation7 + $0x118] sm:$0xf]
        %v1765 = vld [vmem:[#allocation7 + $0x148] sm:$0xf]
        %v1766 = vld [vmem:[#allocation7 + $0x178] sm:$0xf]
        %v1767 = vld [vmem:[#allocation7 + $0x1a8] sm:$0xf]
        %v1768 = vld [vmem:[#allocation7 + $0x1d8] sm:$0xf]
        %v1769 = vld [vmem:[#allocation7 + $0x208] sm:$0xf]
        %v1770 = vld [vmem:[#allocation7 + $0x238] sm:$0xf]
        %v1771 = vld [vmem:[#allocation7 + $0x268] sm:$0xf]
        %v1772 = vld [vmem:[#allocation7 + $0x298] sm:$0xf]
        %v1773 = vld [vmem:[#allocation7 + $0x2c8] sm:$0xf]
        %v1774 = vld [vmem:[#allocation7 + $0x2f8] sm:$0xf]
        %v1775 = vld [vmem:[#allocation8 + $0xc] sm:$0x1]
        %v1776 = vld [vmem:[#allocation7 + $0x2c] sm:$0xf]
        %v1777 = vld [vmem:[#allocation7 + $0x5c] sm:$0xf]
        %v1778 = vld [vmem:[#allocation7 + $0x8c] sm:$0xf]
        %v1779 = vld [vmem:[#allocation7 + $0xbc] sm:$0xf]
        %v1780 = vld [vmem:[#allocation7 + $0xec] sm:$0xf]
        %v1781 = vld [vmem:[#allocation7 + $0x11c] sm:$0xf]
        %v1782 = vld [vmem:[#allocation7 + $0x14c] sm:$0xf]
        %v1783 = vld [vmem:[#allocation7 + $0x17c] sm:$0xf]
        %v1784 = vld [vmem:[#allocation7 + $0x1ac] sm:$0xf]
        %v1785 = vld [vmem:[#allocation7 + $0x1dc] sm:$0xf]
        %v1786 = vld [vmem:[#allocation7 + $0x20c] sm:$0xf]
        %v1787 = vld [vmem:[#allocation7 + $0x23c] sm:$0xf]
        %v1788 = vld [vmem:[#allocation7 + $0x26c] sm:$0xf]
        %v1789 = vld [vmem:[#allocation7 + $0x29c] sm:$0xf]
        %v1790 = vld [vmem:[#allocation7 + $0x2cc] sm:$0xf]
        %v1791 = vld [vmem:[#allocation7 + $0x2fc] sm:$0xf]
        %v1792 = vld [vmem:[#allocation8 + $0xd] sm:$0x1]
        %v1793 = vpack.c.bf16 %v1756, %v1755
        %v1794 = vlaneseq
        %v1795 = vshrl.u32 %v1794, 7
        %v1796 = vsub.s32 0, %v1795
        %v1797 = vrot.slane %v1775, %v1796
        %v1814 = vunpack.c.l.b16 %v1759
        %v1815 = vunpack.c.l.b16 %v1760
        %v1816 = vunpack.c.l.b16 %v1761
        %v1817 = vunpack.c.l.b16 %v1762
        %v1818 = vunpack.c.l.b16 %v1763
        %v1819 = vunpack.c.l.b16 %v1764
        %v1820 = vunpack.c.l.b16 %v1765
        %v1821 = vunpack.c.l.b16 %v1766
        %v1822 = vunpack.c.l.b16 %v1767
        %v1823 = vunpack.c.l.b16 %v1768
        %v1824 = vunpack.c.l.b16 %v1769
        %v1825 = vunpack.c.l.b16 %v1770
        %v1826 = vunpack.c.l.b16 %v1771
        %v1827 = vunpack.c.l.b16 %v1772
        %v1828 = vunpack.c.l.b16 %v1773
        %v1829 = vunpack.c.l.b16 %v1774
        %v1830 = vpack.c.b16 %v1815, %v1814
        %v1831 = vpack.c.b16 %v1817, %v1816
        %v1832 = vpack.c.b16 %v1819, %v1818
        %v1833 = vpack.c.b16 %v1821, %v1820
        %v1834 = vpack.c.b16 %v1823, %v1822
        %v1835 = vpack.c.b16 %v1825, %v1824
        %v1836 = vpack.c.b16 %v1827, %v1826
        %v1837 = vpack.c.b16 %v1829, %v1828
        %1846 = vmatprep.subr.bf16.mxu0 0
        %1847 = vmatpush1.bf16.msra.mxu0 %v1830
        %1848 = vmatprep.subr.bf16.mxu0 0
        %1849 = vmatpush1.bf16.msra.mxu0 %v1831
        %1850 = vmatprep.subr.bf16.mxu0 0
        %1851 = vmatpush1.bf16.msra.mxu0 %v1832
        %1852 = vmatprep.subr.bf16.mxu0 0
        %1853 = vmatpush1.bf16.msra.mxu0 %v1833
        %1854 = vmatprep.subr.bf16.mxu0 0
        %1855 = vmatpush1.bf16.msra.mxu0 %v1834
        %1856 = vmatprep.subr.bf16.mxu0 0
        %1857 = vmatpush1.bf16.msra.mxu0 %v1835
        %1858 = vmatprep.subr.bf16.mxu0 0
        %1859 = vmatpush1.bf16.msra.mxu0 %v1836
        %1860 = vmatprep.subr.bf16.mxu0 0
        %1861 = vmatpush1.bf16.msra.mxu0 %v1837
        %1862 = vmatprep.subr.bf16.mxu0 0
        %1863 = vmatpush1.bf16.msra.mxu0 0
        %1864 = vmatprep.subr.bf16.mxu0 0
        %1865 = vmatpush1.bf16.msra.mxu0 0
        %1866 = vmatprep.subr.bf16.mxu0 0
        %1867 = vmatpush1.bf16.msra.mxu0 0
        %1868 = vmatprep.subr.bf16.mxu0 0
        %1869 = vmatpush1.bf16.msra.mxu0 0
        %1870 = vmatprep.subr.bf16.mxu0 0
        %1871 = vmatpush1.bf16.msra.mxu0 0
        %1872 = vmatprep.subr.bf16.mxu0 0
        %1873 = vmatpush1.bf16.msra.mxu0 0
        %1874 = vmatprep.subr.bf16.mxu0 0
        %1875 = vmatpush1.bf16.msra.mxu0 0
        %1876 = vmatprep.subr.bf16.mxu0 0
        %1877 = vmatpush1.bf16.msra.mxu0 0
        %1878 = vmatprep.mubr.bf16.mxu0 0
        %1879 = vmatmul.mubr.bf16.gmra.mrb[0].mxu0 %v1793
        %v1880 = vpop.f32.mrb[0].mxu0
        %v1881 = vadd.f32 %v1797, %v1880
        %v1882 = vpop.f32.mrb[0].mxu0
        %v1883 = vpop.f32.mrb[0].mxu0
        %v1884 = vadd.f32 %v1797, %v1883
        %v1885 = vpop.f32.mrb[0].mxu0
        %1886 = vdwg.mxu0
        %v1887 = vmul.f32 %v1881, 0.5
        %v1888 = vmul.f32 %v1884, 0.5
        %v1889 = vmul.f32 %v1881, 0.044715
        %v1890 = vmul.f32 %v1884, 0.044715
        %v1891 = vmul.f32 %v1889, %v1881
        %v1892 = vmul.f32 %v1890, %v1884
        %v1893 = vmul.f32 %v1891, %v1881
        %v1894 = vmul.f32 %v1892, %v1884
        %v1895 = vadd.f32 %v1881, %v1893
        %v1896 = vadd.f32 %v1884, %v1894
        %v1897 = vmul.f32 %v1895, 0.7978846
        %v1898 = vmul.f32 %v1896, 0.7978846
        %v1899 = vtanh.pop %v1897
        %v1900 = vtanh.pop %v1898
        %v1901 = vadd.f32 %v1899, 1.0
        %v1902 = vadd.f32 %v1900, 1.0
        %v1903 = vmul.f32 %v1887, %v1901
        %v1904 = vmul.f32 %v1888, %v1902
        %v1905 = vpack.c.bf16 %v1904, %v1903
        %v1906 = vlaneseq
        %v1907 = vshrl.u32 %v1906, 7
        %v1908 = vsub.s32 0, %v1907
        %v1909 = vrot.slane %v1792, %v1908
        %v1926 = vunpack.c.l.b16 %v1776
        %v1927 = vunpack.c.l.b16 %v1777
        %v1928 = vunpack.c.l.b16 %v1778
        %v1929 = vunpack.c.l.b16 %v1779
        %v1930 = vunpack.c.l.b16 %v1780
        %v1931 = vunpack.c.l.b16 %v1781
        %v1932 = vunpack.c.l.b16 %v1782
        %v1933 = vunpack.c.l.b16 %v1783
        %v1934 = vunpack.c.l.b16 %v1784
        %v1935 = vunpack.c.l.b16 %v1785
        %v1936 = vunpack.c.l.b16 %v1786
        %v1937 = vunpack.c.l.b16 %v1787
        %v1938 = vunpack.c.l.b16 %v1788
        %v1939 = vunpack.c.l.b16 %v1789
        %v1940 = vunpack.c.l.b16 %v1790
        %v1941 = vunpack.c.l.b16 %v1791
        %v1942 = vpack.c.b16 %v1927, %v1926
        %v1943 = vpack.c.b16 %v1929, %v1928
        %v1944 = vpack.c.b16 %v1931, %v1930
        %v1945 = vpack.c.b16 %v1933, %v1932
        %v1946 = vpack.c.b16 %v1935, %v1934
        %v1947 = vpack.c.b16 %v1937, %v1936
        %v1948 = vpack.c.b16 %v1939, %v1938
        %v1949 = vpack.c.b16 %v1941, %v1940
        %1958 = vmatprep.subr.bf16.mxu0 0
        %1959 = vmatpush1.bf16.msra.mxu0 %v1942
        %1960 = vmatprep.subr.bf16.mxu0 0
        %1961 = vmatpush1.bf16.msra.mxu0 %v1943
        %1962 = vmatprep.subr.bf16.mxu0 0
        %1963 = vmatpush1.bf16.msra.mxu0 %v1944
        %1964 = vmatprep.subr.bf16.mxu0 0
        %1965 = vmatpush1.bf16.msra.mxu0 %v1945
        %1966 = vmatprep.subr.bf16.mxu0 0
        %1967 = vmatpush1.bf16.msra.mxu0 %v1946
        %1968 = vmatprep.subr.bf16.mxu0 0
        %1969 = vmatpush1.bf16.msra.mxu0 %v1947
        %1970 = vmatprep.subr.bf16.mxu0 0
        %1971 = vmatpush1.bf16.msra.mxu0 %v1948
        %1972 = vmatprep.subr.bf16.mxu0 0
        %1973 = vmatpush1.bf16.msra.mxu0 %v1949
        %1974 = vmatprep.subr.bf16.mxu0 0
        %1975 = vmatpush1.bf16.msra.mxu0 0
        %1976 = vmatprep.subr.bf16.mxu0 0
        %1977 = vmatpush1.bf16.msra.mxu0 0
        %1978 = vmatprep.subr.bf16.mxu0 0
        %1979 = vmatpush1.bf16.msra.mxu0 0
        %1980 = vmatprep.subr.bf16.mxu0 0
        %1981 = vmatpush1.bf16.msra.mxu0 0
        %1982 = vmatprep.subr.bf16.mxu0 0
        %1983 = vmatpush1.bf16.msra.mxu0 0
        %1984 = vmatprep.subr.bf16.mxu0 0
        %1985 = vmatpush1.bf16.msra.mxu0 0
        %1986 = vmatprep.subr.bf16.mxu0 0
        %1987 = vmatpush1.bf16.msra.mxu0 0
        %1988 = vmatprep.subr.bf16.mxu0 0
        %1989 = vmatpush1.bf16.msra.mxu0 0
        %1990 = vmatprep.mubr.bf16.mxu0 0
        %1991 = vmatmul.mubr.bf16.gmra.mrb[0].mxu0 %v1905
        %v1992 = vpop.f32.mrb[0].mxu0
        %v1993 = vadd.f32 %v1909, %v1992
        %v1994 = vpop.f32.mrb[0].mxu0
        %v1995 = vpop.f32.mrb[0].mxu0
        %v1996 = vadd.f32 %v1909, %v1995
        %v1997 = vpop.f32.mrb[0].mxu0
        %1998 = vdwg.mxu0
        %v1999 = vadd.f32 %v1757, %v1993
        %v2000 = vadd.f32 %v1758, %v1996
        %2001 = vst [vmem:[%s373] sm:$0xff] %v1999
        %2002 = vst [vmem:[%s373 + $0x8] sm:$0xff] %v2000
        %s2003 = sand.u32 %s176, 1
        %s2004 = scalar_lea.sflag [#allocation4], %s2003
        %s2005 = sand.u32 %s176, 1
        %s2006 = smul.addr %s2005, 8
        %s2007 = scalar_lea.vmem [#allocation10], %s2006
        %s2008 = sand.u32 %s202, 1
        %s2009 = scalar_lea.sflag [#allocation12], %s2008
        %s2010 = sand.u32 %s202, 1
        %s2011 = smul.addr %s2010, 16
        %s2012 = scalar_lea.vmem [#allocation11], %s2011
        // Predicated region
        $region61: #{tpu_custom_call.1} parent=43 // pred_check
          %p2013 = pneg %p186
        $region62: #{tpu_custom_call.1} parent=43 // pred_check_branch
          %2015 = sbr.rel (%p2013) target = $region64
        $region63: #{tpu_custom_call.1} parent=43 // pred_region
          %s2017 = ssub.s32 128, 128
          %2018 = vsyncadd %s2004, %s2017
          %s2019 = smul.addr %s32, 128
          %s2020 = scalar_lea.hbm %s6, %s2019
          %s2022 = sshll.u32 %s2007, 4
          %s2023 = int_to_ptr.vmem [resolvable:$true] %s2022
          %2025 = dma.vmem_to_hbm [thread:$0]  %s2023, 128, %s2020, %s2004
        $region64: #{tpu_custom_call.1} parent=43 // pred_fallthru
          _
        // Predicated region
        $region65: #{tpu_custom_call.1} parent=43 // pred_check
          %p2026 = pneg %p212
        $region66: #{tpu_custom_call.1} parent=43 // pred_check_branch
          %2028 = sbr.rel (%p2026) target = $region68
        $region67: #{tpu_custom_call.1} parent=43 // pred_region
          %s2030 = ssub.s32 256, 256
          %2031 = vsyncadd %s2009, %s2030
          %s2032 = smul.addr %s32, 2
          %s2033 = smul.addr %s2032, 128
          %s2034 = scalar_lea.hbm %s7, %s2033
          %s2035 = sshll.u32 %s2012, 4
          %s2036 = int_to_ptr.vmem [resolvable:$true] %s2035
          %2041 = dma.vmem_to_hbm [thread:$0]  %s2036, 256, %s2034, %s2009, 128, 128, 8
        $region68: #{tpu_custom_call.1} parent=43 // pred_fallthru
          _
      $region44: #{tpu_custom_call.1} parent=5 // pred_fallthru
        _
      %p2042 = scmp.le.s32.totalorder 2, %s27
      // Predicated region
      $region69: #{tpu_custom_call.1} parent=5 // pred_check
        %p2043 = pneg %p2042
      $region70: #{tpu_custom_call.1} parent=5 // pred_check_branch
        %2045 = sbr.rel (%p2043) target = $region72
      $region71: #{tpu_custom_call.1} parent=5 // pred_region
        %s2046 = ssub.s32 %s27, 2
        // Predicated region
        $region73: #{tpu_custom_call.1} parent=71 // pred_check
          %p2047 = pneg %p192
        $region74: #{tpu_custom_call.1} parent=71 // pred_check_branch
          %2049 = sbr.rel (%p2047) target = $region76
        $region75: #{tpu_custom_call.1} parent=71 // pred_region
          %s2050 = sand.u32 %s177, 1
          %s2051 = scalar_lea.sflag [#allocation4], %s2050
          %s2052 = sand.u32 %s177, 1
          %s2053 = smul.addr %s2052, 8
          %s2054 = scalar_lea.vmem [#allocation10], %s2053
          %2055 = dma.done %s2051, 128
        $region76: #{tpu_custom_call.1} parent=71 // pred_fallthru
          _
        // Predicated region
        $region77: #{tpu_custom_call.1} parent=71 // pred_check
          %p2056 = pneg %p218
        $region78: #{tpu_custom_call.1} parent=71 // pred_check_branch
          %2058 = sbr.rel (%p2056) target = $region80
        $region79: #{tpu_custom_call.1} parent=71 // pred_region
          %s2059 = sand.u32 %s203, 1
          %s2060 = scalar_lea.sflag [#allocation12], %s2059
          %s2061 = sand.u32 %s203, 1
          %s2062 = smul.addr %s2061, 16
          %s2063 = scalar_lea.vmem [#allocation11], %s2062
          %2064 = dma.done %s2060, 256
        $region80: #{tpu_custom_call.1} parent=71 // pred_fallthru
          _
      $region72: #{tpu_custom_call.1} parent=5 // pred_fallthru
        _
    $region6: #{tpu_custom_call.1} parent=1 // loop_footer
      %s31 = sadd.s32 1, %s27
    $region7: #{tpu_custom_call.1} parent=1 // loop_footer_branch
      %26 = sbr.rel target = $region3
    $region8: #{tpu_custom_call.1} parent=1 // loop_exit
      _
    %2065 = vsyncpa [#allocation3], 1
    %s2066 = scalar_lea.sflag [#allocation3], 1
    %2067 = vsyncpa %s2066, 1
    %2068 = vsyncpa [#allocation6], 1
    %s2069 = scalar_lea.sflag [#allocation6], 1
    %2070 = vsyncpa %s2069, 1
    %2071 = vsyncpa [#allocation9], 1
    %2072 = vsyncpa [#allocation4], 1
    %s2073 = scalar_lea.sflag [#allocation4], 1
    %2074 = vsyncpa %s2073, 1
    %2075 = vsyncpa [#allocation12], 1
    %s2076 = scalar_lea.sflag [#allocation12], 1
    %2077 = vsyncpa %s2076, 1

</llo_original>
